<compile_context>
chip_gen: v6e
topology: v6e:2x2x1
jax: 0.10.0
libtpu: 0.0.40
codegen_flags: <defaults>
</compile_context>

<pallas_src>
import jax
import jax.numpy as jnp
from jax.experimental import pallas as pl
from jax.experimental.pallas import tpu as pltpu


HID_PAD = 128  # hidden (64) padded to a full lane width


def link_util_gcn_kernel(x_ref, h_ref, eu_ref, ev_ref,
                         w1_ref, b1_ref, w2_ref, b2_ref,
                         w3u_ref, w3v_ref, b3_ref, w4_ref, b4_ref,
                         out_ref):
    f32, bf16 = jnp.float32, jnp.bfloat16
    bt, n, f_in = x_ref.shape          # graphs per block, nodes, input feats
    e_pad = out_ref.shape[-1]          # edges padded to a multiple of 128
    hid = w1_ref.shape[-1]             # hidden padded to 128 lanes

    x = x_ref[...]                     # [bt, n, f_in]  bf16
    h_hat = h_ref[...]                 # [bt, n, n]     bf16

    # ----- GraphConv 1: relu(H_hat @ (X @ W1) + b1); batch collapsed into M -----
    xw1 = jnp.dot(x.reshape(bt * n, f_in), w1_ref[...],
                  preferred_element_type=f32)
    h1 = jnp.einsum('bij,bjh->bih', h_hat,
                    xw1.reshape(bt, n, hid).astype(bf16),
                    preferred_element_type=f32) + b1_ref[...]
    h1 = jnp.maximum(h1, 0.0)
    # TODO(synk): training-mode dropout (p=0.3) omitted; eval-mode dropout is identity.

    # ----- GraphConv 2: H_hat @ (H1 @ W2) + b2 -----
    hw2 = jnp.dot(h1.reshape(bt * n, hid).astype(bf16), w2_ref[...],
                  preferred_element_type=f32)
    h2 = jnp.einsum('bij,bjh->bih', h_hat,
                    hw2.reshape(bt, n, hid).astype(bf16),
                    preferred_element_type=f32) + b2_ref[...]
    h2 = h2.astype(bf16)

    # ----- Edge endpoint gather: one-hot built in-kernel (VPU iota/compare), -----
    # ----- selection done on the MXU. Padded edges use index -1 => zero rows. -----
    iota_n = jax.lax.broadcasted_iota(jnp.int32, (bt, e_pad, n), 2)
    sel_u = (iota_n == eu_ref[...]).astype(bf16)        # [bt, e_pad, n]
    sel_v = (iota_n == ev_ref[...]).astype(bf16)
    h_u = jnp.einsum('ben,bnh->beh', sel_u, h2, preferred_element_type=f32)
    h_v = jnp.einsum('ben,bnh->beh', sel_v, h2, preferred_element_type=f32)

    # ----- Edge MLP layer 1: Linear(2H -> H) with concat folded into u/v halves -----
    m = (jnp.dot(h_u.reshape(bt * e_pad, hid).astype(bf16), w3u_ref[...],
                 preferred_element_type=f32)
         + jnp.dot(h_v.reshape(bt * e_pad, hid).astype(bf16), w3v_ref[...],
                   preferred_element_type=f32)
         + b3_ref[...])
    m = jnp.maximum(m, 0.0)

    # ----- Final Linear(H -> 1): VPU multiply by the w4 row + lane reduce; -----
    # ----- scores land edge-major in lanes => dense [bt, 1, e_pad] store.   -----
    scores = jnp.sum(m.reshape(bt, e_pad, hid) * w4_ref[...], axis=-1) + b4_ref[...]
    out_ref[...] = scores[:, None, :]


def link_util_gcn(X, H_hat, edge_index, W1, b1, W2, b2, W3, b3, W4, b4,
                  *, hid_pad=HID_PAD, graphs_per_block=None):
    """Batched LinkUtilGCN forward (eval mode) in a single pallas_call.

    X:          [B, N, F_in]  node features
    H_hat:      [B, N, N]     normalized adjacency
    edge_index: [B, E, 2]     int32 endpoints of the E query edges per graph
    Returns     [B, E]        per-edge scores (f32)
    """
    f32, bf16 = jnp.float32, jnp.bfloat16
    B, N, f_in = X.shape
    hidden = W1.shape[1]
    assert hidden <= hid_pad
    E = edge_index.shape[1]
    e_pad = pl.cdiv(E, 128) * 128       # edge axis padded to lane width

    if graphs_per_block is None:
        # Keep >=2 grid steps so both v7x TensorCores get work; on v5e/v6e
        # (1 TC) any divisor of B is fine — fold as much as VMEM allows.
        graphs_per_block = B // 2 if (B % 2 == 0 and B >= 2) else 1
    assert B % graphs_per_block == 0
    bt = graphs_per_block

    def pad2(a, rows, cols, dtype):
        out = jnp.zeros((rows, cols), f32)
        return out.at[: a.shape[0], : a.shape[1]].set(a).astype(dtype)

    # bf16 operands for the MXU (zero padding is exact in bf16); biases stay f32
    # and are added to the f32 accumulations.
    Xb = X.astype(bf16)
    Hb = H_hat.astype(bf16)
    W1p = pad2(W1, f_in, hid_pad, bf16)
    W2p = pad2(W2, hid_pad, hid_pad, bf16)
    W3u = pad2(W3[:hidden], hid_pad, hid_pad, bf16)   # edge-MLP layer 1, h_u half
    W3v = pad2(W3[hidden:], hid_pad, hid_pad, bf16)   # edge-MLP layer 1, h_v half
    b1p = pad2(b1.reshape(1, -1), 1, hid_pad, f32)
    b2p = pad2(b2.reshape(1, -1), 1, hid_pad, f32)
    b3p = pad2(b3.reshape(1, -1), 1, hid_pad, f32)
    w4r = pad2(W4.reshape(1, -1), 1, hid_pad, f32)    # W4 column as a [1, hid_pad] row
    b4p = b4.reshape(1, 1).astype(f32)

    # Tiny int32 endpoint indices (replaces the old B*E_pad*N one-hot HBM inputs).
    # Fill value -1 => all-zero one-hot rows for padded edges; rows E..e_pad of
    # the output are garbage (relu(b3)@w4 + b4) and sliced off below.
    fill = jnp.full((B, e_pad), -1, jnp.int32)
    eu = fill.at[:, :E].set(edge_index[:, :, 0])[..., None]   # [B, e_pad, 1]
    ev = fill.at[:, :E].set(edge_index[:, :, 1])[..., None]

    flops = 2 * B * (N * f_in * hid_pad
                     + 2 * N * N * hid_pad
                     + N * hid_pad * hid_pad
                     + 2 * e_pad * N * hid_pad
                     + 2 * e_pad * hid_pad * hid_pad
                     + e_pad * hid_pad)
    bytes_accessed = int(
        2 * (Xb.size + Hb.size + W1p.size + W2p.size + W3u.size + W3v.size)
        + 4 * (eu.size + ev.size + b1p.size + b2p.size + b3p.size
               + w4r.size + b4p.size)
        + 4 * B * e_pad)
    cost = pl.CostEstimate(flops=int(flops), transcendentals=0,
                           bytes_accessed=bytes_accessed)

    def wspec(r, c):
        return pl.BlockSpec((r, c), lambda b: (0, 0))

    out = pl.pallas_call(
        link_util_gcn_kernel,
        out_shape=jax.ShapeDtypeStruct((B, 1, e_pad), f32),
        grid=(B // bt,),
        in_specs=[
            pl.BlockSpec((bt, N, f_in), lambda b: (b, 0, 0)),    # X        (bf16)
            pl.BlockSpec((bt, N, N), lambda b: (b, 0, 0)),       # H_hat    (bf16)
            pl.BlockSpec((bt, e_pad, 1), lambda b: (b, 0, 0)),   # edge u   (int32)
            pl.BlockSpec((bt, e_pad, 1), lambda b: (b, 0, 0)),   # edge v   (int32)
            wspec(f_in, hid_pad),                                # W1
            wspec(1, hid_pad),                                   # b1
            wspec(hid_pad, hid_pad),                             # W2
            wspec(1, hid_pad),                                   # b2
            wspec(hid_pad, hid_pad),                             # W3u
            wspec(hid_pad, hid_pad),                             # W3v
            wspec(1, hid_pad),                                   # b3
            wspec(1, hid_pad),                                   # w4 row
            wspec(1, 1),                                         # b4
        ],
        out_specs=pl.BlockSpec((bt, 1, e_pad), lambda b: (b, 0, 0)),
        cost_estimate=cost,
        compiler_params=pltpu.CompilerParams(
            dimension_semantics=("parallel",),
            # Sized for v7x's 64 MiB VMEM (half of v5e/v6e) with headroom; also
            # lifts v5e's 16 MiB default scoped limit when N grows.
            vmem_limit_bytes=48 * 1024 * 1024),
    )(Xb, Hb, eu, ev, W1p, b1p, W2p, b2p, W3u, W3v, b3p, w4r, b4p)

    return out[:, 0, :E]


def xavier_uniform(key, fan_in, fan_out):
    bound = jnp.sqrt(6.0 / (fan_in + fan_out))
    return jax.random.uniform(key, (fan_in, fan_out), jnp.float32, -bound, bound)


if __name__ == "__main__":
    key = jax.random.PRNGKey(0)
    keys = jax.random.split(key, 9)

    B, N, in_f, hidden, E = 4, 8, 4, 64, 10

    # Node features per graph.
    X = jax.random.normal(keys[0], (B, N, in_f), jnp.float32)

    # Per-graph symmetric, self-looped, degree-normalized adjacency (GCN H_hat).
    def make_h_hat(k):
        A = (jax.random.uniform(k, (N, N)) > 0.5).astype(jnp.float32)
        A = jnp.maximum(A, A.T) + jnp.eye(N, dtype=jnp.float32)
        d_inv_sqrt = 1.0 / jnp.sqrt(jnp.sum(A, axis=1))
        return A * d_inv_sqrt[:, None] * d_inv_sqrt[None, :]

    H_hat = jax.vmap(make_h_hat)(jax.random.split(keys[1], B))

    # Query edges.
    edge_index = jax.random.randint(keys[2], (B, E, 2), 0, N, dtype=jnp.int32)

    # Parameters (shapes matching the PyTorch module; x @ W convention).
    W1 = xavier_uniform(keys[3], in_f, hidden)
    b1 = jnp.zeros((hidden,), jnp.float32)
    W2 = xavier_uniform(keys[4], hidden, hidden)
    b2 = jnp.zeros((hidden,), jnp.float32)
    W3 = xavier_uniform(keys[5], 2 * hidden, hidden)           # edge_mlp[0]
    b3 = 0.01 * jax.random.normal(keys[6], (hidden,), jnp.float32)
    W4 = xavier_uniform(keys[7], hidden, 1)                    # edge_mlp[2]
    b4 = 0.01 * jax.random.normal(keys[8], (1,), jnp.float32)

    out = link_util_gcn(X, H_hat, edge_index, W1, b1, W2, b2, W3, b3, W4, b4)
    out = jax.block_until_ready(out)

    # Pure-JAX f32 reference (eval mode, module semantics).
    def ref_forward(x, h_hat, ei):
        H1 = jnp.maximum(h_hat @ (x @ W1) + b1, 0.0)
        H2 = h_hat @ (H1 @ W2) + b2
        e = jnp.concatenate([H2[ei[:, 0]], H2[ei[:, 1]]], axis=1)
        m = jnp.maximum(e @ W3 + b3, 0.0)
        return (m @ W4 + b4)[:, 0]

    ref_f32 = jax.vmap(ref_forward)(X, H_hat, edge_index)

    # bf16-operand / f32-accumulate reference mirroring the kernel's casts, for a
    # tight check of the kernel math itself.
    def ref_forward_bf16(x, h_hat, ei):
        bf16, f32 = jnp.bfloat16, jnp.float32
        xb, hb = x.astype(bf16), h_hat.astype(bf16)
        xw1 = jnp.dot(xb, W1.astype(bf16), preferred_element_type=f32)
        H1 = jnp.maximum(jnp.dot(hb, xw1.astype(bf16),
                                 preferred_element_type=f32) + b1, 0.0)
        hw2 = jnp.dot(H1.astype(bf16), W2.astype(bf16), preferred_element_type=f32)
        H2 = jnp.dot(hb, hw2.astype(bf16), preferred_element_type=f32) + b2
        hu = H2[ei[:, 0]].astype(bf16)
        hv = H2[ei[:, 1]].astype(bf16)
        m = jnp.maximum(
            jnp.dot(hu, W3[:hidden].astype(bf16), preferred_element_type=f32)
            + jnp.dot(hv, W3[hidden:].astype(bf16), preferred_element_type=f32)
            + b3, 0.0)
        return jnp.sum(m * W4[:, 0], axis=-1) + b4[0]

    ref_bf = jax.vmap(ref_forward_bf16)(X, H_hat, edge_index)

    assert out.shape == (B, E)
    # Kernel matches the bf16-operand/f32-accumulate math tightly...
    assert jnp.allclose(out, ref_bf, atol=1e-3, rtol=1e-3), "mismatch vs bf16 reference"
    # ...and the f32 module semantics within bf16-operand-induced error.
    rel_err = jnp.max(jnp.abs(out - ref_f32)) / (jnp.max(jnp.abs(ref_f32)) + 1e-6)
    assert rel_err < 5e-2, f"too far from f32 reference: rel_err={rel_err}"

    print("KERNEL_OK")
</pallas_src>

<mosaic_0001>
module attributes {stable_mosaic.version = 11 : i64} {
  func.func @link_util_gcn_kernel(%arg0: i32, %arg1: memref<2x8x4xbf16, #tpu.memory_space<vmem>>, %arg2: memref<2x8x8xbf16, #tpu.memory_space<vmem>>, %arg3: memref<2x128x1xi32, #tpu.memory_space<vmem>>, %arg4: memref<2x128x1xi32, #tpu.memory_space<vmem>>, %arg5: memref<4x128xbf16, #tpu.memory_space<vmem>>, %arg6: memref<1x128xf32, #tpu.memory_space<vmem>>, %arg7: memref<128x128xbf16, #tpu.memory_space<vmem>>, %arg8: memref<1x128xf32, #tpu.memory_space<vmem>>, %arg9: memref<128x128xbf16, #tpu.memory_space<vmem>>, %arg10: memref<128x128xbf16, #tpu.memory_space<vmem>>, %arg11: memref<1x128xf32, #tpu.memory_space<vmem>>, %arg12: memref<1x128xf32, #tpu.memory_space<vmem>>, %arg13: memref<1x1xf32, #tpu.memory_space<vmem>>, %arg14: memref<2x1x128xf32, #tpu.memory_space<vmem>>) attributes {dimension_semantics = [#tpu.dimension_semantics<parallel>], iteration_bounds = array<i64: 2>, scalar_prefetch = 0 : i64, scratch_operands = 0 : i64, tpu.core_type = #tpu.core_type<tc>, window_params = [{transform_indices = @transform_0, window_bounds = array<i64: 2, 8, 4>}, {transform_indices = @transform_1, window_bounds = array<i64: 2, 8, 8>}, {transform_indices = @transform_2, window_bounds = array<i64: 2, 128, 1>}, {transform_indices = @transform_3, window_bounds = array<i64: 2, 128, 1>}, {pipeline_mode = #tpu.pipeline_mode<synchronous>, transform_indices = @transform_4, window_bounds = array<i64: 4, 128>}, {pipeline_mode = #tpu.pipeline_mode<synchronous>, transform_indices = @transform_5, window_bounds = array<i64: 1, 128>}, {pipeline_mode = #tpu.pipeline_mode<synchronous>, transform_indices = @transform_6, window_bounds = array<i64: 128, 128>}, {pipeline_mode = #tpu.pipeline_mode<synchronous>, transform_indices = @transform_7, window_bounds = array<i64: 1, 128>}, {pipeline_mode = #tpu.pipeline_mode<synchronous>, transform_indices = @transform_8, window_bounds = array<i64: 128, 128>}, {pipeline_mode = #tpu.pipeline_mode<synchronous>, transform_indices = @transform_9, window_bounds = array<i64: 128, 128>}, {pipeline_mode = #tpu.pipeline_mode<synchronous>, transform_indices = @transform_10, window_bounds = array<i64: 1, 128>}, {pipeline_mode = #tpu.pipeline_mode<synchronous>, transform_indices = @transform_11, window_bounds = array<i64: 1, 128>}, {pipeline_mode = #tpu.pipeline_mode<synchronous>, transform_indices = @transform_12, window_bounds = array<i64: 1, 1>}, {transform_indices = @transform_13, window_bounds = array<i64: 2, 1, 128>}]} {
    %c0 = arith.constant 0 : index
    %c0_0 = arith.constant 0 : index
    %c0_1 = arith.constant 0 : index
    %0 = vector.load %arg1[%c0, %c0_0, %c0_1] : memref<2x8x4xbf16, #tpu.memory_space<vmem>>, vector<2x8x4xbf16>
    %c0_2 = arith.constant 0 : index
    %c0_3 = arith.constant 0 : index
    %c0_4 = arith.constant 0 : index
    %1 = vector.load %arg2[%c0_2, %c0_3, %c0_4] : memref<2x8x8xbf16, #tpu.memory_space<vmem>>, vector<2x8x8xbf16>
    %2 = vector.shape_cast %0 : vector<2x8x4xbf16> to vector<16x4xbf16>
    %c0_5 = arith.constant 0 : index
    %c0_6 = arith.constant 0 : index
    %3 = vector.load %arg5[%c0_5, %c0_6] : memref<4x128xbf16, #tpu.memory_space<vmem>>, vector<4x128xbf16>
    %cst = arith.constant dense<0.000000e+00> : vector<16x128xf32>
    %4 = tpu.matmul %2, %3, %cst {dimension_numbers = #tpu.dot_dimension_numbers<[1], [0], [0], [1], [0, 0, 1, 1], [], []>} : vector<16x4xbf16>, vector<4x128xbf16>, vector<16x128xf32> -> vector<16x128xf32>
    %5 = vector.shape_cast %4 : vector<16x128xf32> to vector<2x8x128xf32>
    %6 = arith.truncf %5 : vector<2x8x128xf32> to vector<2x8x128xbf16>
    "tpu.trace_start"() <{level = 10 : i32, message = "bij,bjh->bih"}> : () -> ()
    %cst_7 = arith.constant dense<0.000000e+00> : vector<2x8x128xf32>
    %7 = tpu.matmul %1, %6, %cst_7 {dimension_numbers = #tpu.dot_dimension_numbers<[2], [1], [1], [2], [0, 0, 0, 1, 1, 2], [0], [0]>} : vector<2x8x8xbf16>, vector<2x8x128xbf16>, vector<2x8x128xf32> -> vector<2x8x128xf32>
    "tpu.trace_stop"() : () -> ()
    %c0_8 = arith.constant 0 : index
    %c0_9 = arith.constant 0 : index
    %8 = vector.load %arg6[%c0_8, %c0_9] : memref<1x128xf32, #tpu.memory_space<vmem>>, vector<1x128xf32>
    %9 = vector.shape_cast %8 : vector<1x128xf32> to vector<1x1x128xf32>
    %10 = vector.broadcast %9 : vector<1x1x128xf32> to vector<2x8x128xf32>
    %11 = arith.addf %7, %10 : vector<2x8x128xf32>
    %cst_10 = arith.constant 0.000000e+00 : f32
    %12 = vector.broadcast %cst_10 : f32 to vector<2x8x128xf32>
    %13 = arith.maximumf %11, %12 : vector<2x8x128xf32>
    %14 = vector.shape_cast %13 : vector<2x8x128xf32> to vector<16x128xf32>
    %15 = arith.truncf %14 : vector<16x128xf32> to vector<16x128xbf16>
    %c0_11 = arith.constant 0 : index
    %c0_12 = arith.constant 0 : index
    %16 = vector.load %arg7[%c0_11, %c0_12] : memref<128x128xbf16, #tpu.memory_space<vmem>>, vector<128x128xbf16>
    %cst_13 = arith.constant dense<0.000000e+00> : vector<16x128xf32>
    %17 = tpu.matmul %15, %16, %cst_13 {dimension_numbers = #tpu.dot_dimension_numbers<[1], [0], [0], [1], [0, 0, 1, 1], [], []>} : vector<16x128xbf16>, vector<128x128xbf16>, vector<16x128xf32> -> vector<16x128xf32>
    %18 = vector.shape_cast %17 : vector<16x128xf32> to vector<2x8x128xf32>
    %19 = arith.truncf %18 : vector<2x8x128xf32> to vector<2x8x128xbf16>
    "tpu.trace_start"() <{level = 10 : i32, message = "bij,bjh->bih"}> : () -> ()
    %cst_14 = arith.constant dense<0.000000e+00> : vector<2x8x128xf32>
    %20 = tpu.matmul %1, %19, %cst_14 {dimension_numbers = #tpu.dot_dimension_numbers<[2], [1], [1], [2], [0, 0, 0, 1, 1, 2], [0], [0]>} : vector<2x8x8xbf16>, vector<2x8x128xbf16>, vector<2x8x128xf32> -> vector<2x8x128xf32>
    "tpu.trace_stop"() : () -> ()
    %c0_15 = arith.constant 0 : index
    %c0_16 = arith.constant 0 : index
    %21 = vector.load %arg8[%c0_15, %c0_16] : memref<1x128xf32, #tpu.memory_space<vmem>>, vector<1x128xf32>
    %22 = vector.shape_cast %21 : vector<1x128xf32> to vector<1x1x128xf32>
    %23 = vector.broadcast %22 : vector<1x1x128xf32> to vector<2x8x128xf32>
    %24 = arith.addf %20, %23 : vector<2x8x128xf32>
    %25 = arith.truncf %24 : vector<2x8x128xf32> to vector<2x8x128xbf16>
    %26 = tpu.iota {dimensions = array<i32: 2>} : vector<2x128x8xi32>
    %c0_17 = arith.constant 0 : index
    %c0_18 = arith.constant 0 : index
    %c0_19 = arith.constant 0 : index
    %27 = vector.load %arg3[%c0_17, %c0_18, %c0_19] : memref<2x128x1xi32, #tpu.memory_space<vmem>>, vector<2x128x1xi32>
    %28 = vector.broadcast %27 : vector<2x128x1xi32> to vector<2x128x8xi32>
    %29 = arith.cmpi eq, %26, %28 : vector<2x128x8xi32>
    %30 = arith.extui %29 : vector<2x128x8xi1> to vector<2x128x8xi32>
    %31 = arith.sitofp %30 : vector<2x128x8xi32> to vector<2x128x8xf32>
    %32 = arith.truncf %31 : vector<2x128x8xf32> to vector<2x128x8xbf16>
    %c0_20 = arith.constant 0 : index
    %c0_21 = arith.constant 0 : index
    %c0_22 = arith.constant 0 : index
    %33 = vector.load %arg4[%c0_20, %c0_21, %c0_22] : memref<2x128x1xi32, #tpu.memory_space<vmem>>, vector<2x128x1xi32>
    %34 = vector.broadcast %33 : vector<2x128x1xi32> to vector<2x128x8xi32>
    %35 = arith.cmpi eq, %26, %34 : vector<2x128x8xi32>
    %36 = arith.extui %35 : vector<2x128x8xi1> to vector<2x128x8xi32>
    %37 = arith.sitofp %36 : vector<2x128x8xi32> to vector<2x128x8xf32>
    %38 = arith.truncf %37 : vector<2x128x8xf32> to vector<2x128x8xbf16>
    "tpu.trace_start"() <{level = 10 : i32, message = "ben,bnh->beh"}> : () -> ()
    %cst_23 = arith.constant dense<0.000000e+00> : vector<2x128x128xf32>
    %39 = tpu.matmul %32, %25, %cst_23 {dimension_numbers = #tpu.dot_dimension_numbers<[2], [1], [1], [2], [0, 0, 0, 1, 1, 2], [0], [0]>} : vector<2x128x8xbf16>, vector<2x8x128xbf16>, vector<2x128x128xf32> -> vector<2x128x128xf32>
    %cst_24 = arith.constant dense<0.000000e+00> : vector<2x128x128xf32>
    %40 = tpu.matmul %38, %25, %cst_24 {dimension_numbers = #tpu.dot_dimension_numbers<[2], [1], [1], [2], [0, 0, 0, 1, 1, 2], [0], [0]>} : vector<2x128x8xbf16>, vector<2x8x128xbf16>, vector<2x128x128xf32> -> vector<2x128x128xf32>
    "tpu.trace_stop"() : () -> ()
    %41 = vector.shape_cast %39 : vector<2x128x128xf32> to vector<256x128xf32>
    %42 = arith.truncf %41 : vector<256x128xf32> to vector<256x128xbf16>
    %c0_25 = arith.constant 0 : index
    %c0_26 = arith.constant 0 : index
    %43 = vector.load %arg9[%c0_25, %c0_26] : memref<128x128xbf16, #tpu.memory_space<vmem>>, vector<128x128xbf16>
    %cst_27 = arith.constant dense<0.000000e+00> : vector<256x128xf32>
    %44 = tpu.matmul %42, %43, %cst_27 {dimension_numbers = #tpu.dot_dimension_numbers<[1], [0], [0], [1], [0, 0, 1, 1], [], []>} : vector<256x128xbf16>, vector<128x128xbf16>, vector<256x128xf32> -> vector<256x128xf32>
    %45 = vector.shape_cast %40 : vector<2x128x128xf32> to vector<256x128xf32>
    %46 = arith.truncf %45 : vector<256x128xf32> to vector<256x128xbf16>
    %c0_28 = arith.constant 0 : index
    %c0_29 = arith.constant 0 : index
    %47 = vector.load %arg10[%c0_28, %c0_29] : memref<128x128xbf16, #tpu.memory_space<vmem>>, vector<128x128xbf16>
    %cst_30 = arith.constant dense<0.000000e+00> : vector<256x128xf32>
    %48 = tpu.matmul %46, %47, %cst_30 {dimension_numbers = #tpu.dot_dimension_numbers<[1], [0], [0], [1], [0, 0, 1, 1], [], []>} : vector<256x128xbf16>, vector<128x128xbf16>, vector<256x128xf32> -> vector<256x128xf32>
    %49 = arith.addf %44, %48 : vector<256x128xf32>
    %c0_31 = arith.constant 0 : index
    %c0_32 = arith.constant 0 : index
    %50 = vector.load %arg11[%c0_31, %c0_32] : memref<1x128xf32, #tpu.memory_space<vmem>>, vector<1x128xf32>
    %51 = vector.broadcast %50 : vector<1x128xf32> to vector<256x128xf32>
    %52 = arith.addf %49, %51 : vector<256x128xf32>
    %cst_33 = arith.constant 0.000000e+00 : f32
    %53 = vector.broadcast %cst_33 : f32 to vector<256x128xf32>
    %54 = arith.maximumf %52, %53 : vector<256x128xf32>
    %55 = vector.shape_cast %54 : vector<256x128xf32> to vector<2x128x128xf32>
    %c0_34 = arith.constant 0 : index
    %c0_35 = arith.constant 0 : index
    %56 = vector.load %arg12[%c0_34, %c0_35] : memref<1x128xf32, #tpu.memory_space<vmem>>, vector<1x128xf32>
    %57 = vector.shape_cast %56 : vector<1x128xf32> to vector<1x1x128xf32>
    %58 = vector.broadcast %57 : vector<1x1x128xf32> to vector<2x128x128xf32>
    %59 = arith.mulf %55, %58 : vector<2x128x128xf32>
    %cst_36 = arith.constant dense<0.000000e+00> : vector<2x128xf32>
    %60 = vector.multi_reduction <add>, %59, %cst_36 [2] : vector<2x128x128xf32> to vector<2x128xf32>
    %c0_37 = arith.constant 0 : index
    %c0_38 = arith.constant 0 : index
    %61 = vector.load %arg13[%c0_37, %c0_38] : memref<1x1xf32, #tpu.memory_space<vmem>>, vector<1x1xf32>
    %62 = vector.broadcast %61 : vector<1x1xf32> to vector<2x128xf32>
    %63 = arith.addf %60, %62 : vector<2x128xf32>
    %64 = vector.shape_cast %63 : vector<2x128xf32> to vector<2x1x128xf32>
    %c0_39 = arith.constant 0 : index
    %c0_40 = arith.constant 0 : index
    %c0_41 = arith.constant 0 : index
    %65 = vector.load %arg14[%c0_39, %c0_40, %c0_41] : memref<2x1x128xf32, #tpu.memory_space<vmem>>, vector<2x1x128xf32>
    tpu.vector_store %arg14[%c0_39, %c0_40, %c0_41], %64 {strides = array<i32>} : memref<2x1x128xf32, #tpu.memory_space<vmem>>, vector<2x1x128xf32>,
    return
  }
  func.func @transform_0(%arg0: i32) -> (i32, i32, i32) {
    %c0_i32 = arith.constant 0 : i32
    %c0_i32_0 = arith.constant 0 : i32
    %c0_i32_1 = arith.constant 0 : i32
    return %arg0, %c0_i32, %c0_i32_0 : i32, i32, i32
  }
  func.func @transform_1(%arg0: i32) -> (i32, i32, i32) {
    %c0_i32 = arith.constant 0 : i32
    %c0_i32_0 = arith.constant 0 : i32
    %c0_i32_1 = arith.constant 0 : i32
    return %arg0, %c0_i32, %c0_i32_0 : i32, i32, i32
  }
  func.func @transform_2(%arg0: i32) -> (i32, i32, i32) {
    %c0_i32 = arith.constant 0 : i32
    %c0_i32_0 = arith.constant 0 : i32
    %c0_i32_1 = arith.constant 0 : i32
    return %arg0, %c0_i32, %c0_i32_0 : i32, i32, i32
  }
  func.func @transform_3(%arg0: i32) -> (i32, i32, i32) {
    %c0_i32 = arith.constant 0 : i32
    %c0_i32_0 = arith.constant 0 : i32
    %c0_i32_1 = arith.constant 0 : i32
    return %arg0, %c0_i32, %c0_i32_0 : i32, i32, i32
  }
  func.func @transform_4(%arg0: i32) -> (i32, i32) {
    %c0_i32 = arith.constant 0 : i32
    %c0_i32_0 = arith.constant 0 : i32
    %c0_i32_1 = arith.constant 0 : i32
    return %c0_i32, %c0_i32_0 : i32, i32
  }
  func.func @transform_5(%arg0: i32) -> (i32, i32) {
    %c0_i32 = arith.constant 0 : i32
    %c0_i32_0 = arith.constant 0 : i32
    %c0_i32_1 = arith.constant 0 : i32
    return %c0_i32, %c0_i32_0 : i32, i32
  }
  func.func @transform_6(%arg0: i32) -> (i32, i32) {
    %c0_i32 = arith.constant 0 : i32
    %c0_i32_0 = arith.constant 0 : i32
    %c0_i32_1 = arith.constant 0 : i32
    return %c0_i32, %c0_i32_0 : i32, i32
  }
  func.func @transform_7(%arg0: i32) -> (i32, i32) {
    %c0_i32 = arith.constant 0 : i32
    %c0_i32_0 = arith.constant 0 : i32
    %c0_i32_1 = arith.constant 0 : i32
    return %c0_i32, %c0_i32_0 : i32, i32
  }
  func.func @transform_8(%arg0: i32) -> (i32, i32) {
    %c0_i32 = arith.constant 0 : i32
    %c0_i32_0 = arith.constant 0 : i32
    %c0_i32_1 = arith.constant 0 : i32
    return %c0_i32, %c0_i32_0 : i32, i32
  }
  func.func @transform_9(%arg0: i32) -> (i32, i32) {
    %c0_i32 = arith.constant 0 : i32
    %c0_i32_0 = arith.constant 0 : i32
    %c0_i32_1 = arith.constant 0 : i32
    return %c0_i32, %c0_i32_0 : i32, i32
  }
  func.func @transform_10(%arg0: i32) -> (i32, i32) {
    %c0_i32 = arith.constant 0 : i32
    %c0_i32_0 = arith.constant 0 : i32
    %c0_i32_1 = arith.constant 0 : i32
    return %c0_i32, %c0_i32_0 : i32, i32
  }
  func.func @transform_11(%arg0: i32) -> (i32, i32) {
    %c0_i32 = arith.constant 0 : i32
    %c0_i32_0 = arith.constant 0 : i32
    %c0_i32_1 = arith.constant 0 : i32
    return %c0_i32, %c0_i32_0 : i32, i32
  }
  func.func @transform_12(%arg0: i32) -> (i32, i32) {
    %c0_i32 = arith.constant 0 : i32
    %c0_i32_0 = arith.constant 0 : i32
    %c0_i32_1 = arith.constant 0 : i32
    return %c0_i32, %c0_i32_0 : i32, i32
  }
  func.func @transform_13(%arg0: i32) -> (i32, i32, i32) {
    %c0_i32 = arith.constant 0 : i32
    %c0_i32_0 = arith.constant 0 : i32
    %c0_i32_1 = arith.constant 0 : i32
    return %arg0, %c0_i32, %c0_i32_0 : i32, i32, i32
  }
}

</mosaic_0001>

<llo_original>
// kernel: tpu_custom_call.1
$region0: #{tpu_custom_call.1}
  #allocation0 [shape = 'u32[]', space=smem, size = 0x4, offset = 0x4, fixed_abs, tag = 'smem constant byte address 0x4 - core index']
  #allocation1 [shape = 'u32[144,128]{1,0:T(1,128)}', space=vmem, size = 0x12000, scoped, tag = 'internal scratch']
  #allocation2 [shape = 'f32[1,1]{1,0:T(1,128)S(1)}', space=vmem, size = 0x200, scoped, tag = 'scoped memory for tpu_custom_call.1']
  %s0 = inlined_call_operand.vmem [shape: bf16[4,8,4], index: 0, kind: input, shape index: {}]
  %s1 = inlined_call_operand.vmem [shape: bf16[4,8,8], index: 1, kind: input, shape index: {}]
  %s2 = inlined_call_operand.vmem [shape: s32[4,128,1], index: 2, kind: input, shape index: {}]
  %s3 = inlined_call_operand.vmem [shape: s32[4,128,1], index: 3, kind: input, shape index: {}]
  %s4 = inlined_call_operand.vmem [shape: bf16[4,128], index: 4, kind: input, shape index: {}]
  %s5 = inlined_call_operand.vmem [shape: f32[1,128], index: 5, kind: input, shape index: {}]
  %s6 = inlined_call_operand.vmem [shape: bf16[128,128], index: 6, kind: input, shape index: {}]
  %s7 = inlined_call_operand.vmem [shape: f32[1,128], index: 7, kind: input, shape index: {}]
  %s8 = inlined_call_operand.vmem [shape: bf16[128,128], index: 8, kind: input, shape index: {}]
  %s9 = inlined_call_operand.vmem [shape: bf16[128,128], index: 9, kind: input, shape index: {}]
  %s10 = inlined_call_operand.vmem [shape: f32[1,128], index: 10, kind: input, shape index: {}]
  %s11 = inlined_call_operand.vmem [shape: f32[1,128], index: 11, kind: input, shape index: {}]
  %s12 = inlined_call_operand.<no memory space> [shape: f32[1,1], index: 12, kind: input, shape index: {}]
  %s13 = inlined_call_operand.hbm [shape: f32[4,1,128], index: 13, kind: output, shape index: {}]
  %s14 = sld [smem:[#allocation0]]
  $region85: #{tpu_custom_call.1} parent=0
    _
  %s16 = ssub.s32 1, %s14
  %s17 = scalar_select 0, %s16, %s14
  %v18 = vstv %s12
  %19 = vst [vmem:[#allocation2] sm:$0x1] %v18
  $region1: #{tpu_custom_call.1} parent=0
    #allocation3 [shape = 'u8[2048]{0}', space=vmem, size = 0x800, scoped, tag = 'output window, operand 0']
    #allocation4 [shape = 's32[2]{0}', space=sflag, size = 0x8, scoped, tag = 'scoped memory for tpu_custom_call.1']
    %20 = vsyncpa [#allocation4], 0
    %s21 = scalar_lea.sflag [#allocation4], 1
    %22 = vsyncpa %s21, 0
    loop: start=0, step=1, limit=4
    $region2: #{tpu_custom_call.1} parent=1 // loop_pre_header
      _
    $region3: #{tpu_custom_call.1} parent=1 // loop_header
      %s24 = sphi 0, %s28
      %p25 = scmp.ge.s32.totalorder %s24, 4
      %s34 = sphi 0, %s36
      %s37 = sphi 0, %s34
      %s38 = sphi 0, %s37
      %s54 = sphi 0, %s38
      %s60 = sphi 0, %s62
      %s63 = sphi 0, %s60
      %s64 = sphi 0, %s63
      %s80 = sphi 0, %s64
      %s86 = sphi 0, %s88
      %s89 = sphi 0, %s86
      %s90 = sphi 0, %s89
      %s106 = sphi 0, %s90
      %s112 = sphi 0, %s114
      %s115 = sphi 0, %s112
      %s116 = sphi 0, %s115
      %s132 = sphi 0, %s116
      %s136 = sphi 0, %s136
      %s138 = sphi 0, %s136
      %s139 = sphi 0, %s138
      %s153 = sphi 0, %s139
      %s157 = sphi 0, %s157
      %s159 = sphi 0, %s157
      %s160 = sphi 0, %s159
      %s174 = sphi 0, %s160
      %s178 = sphi 0, %s178
      %s180 = sphi 0, %s178
      %s181 = sphi 0, %s180
      %s195 = sphi 0, %s181
      %s199 = sphi 0, %s199
      %s201 = sphi 0, %s199
      %s202 = sphi 0, %s201
      %s216 = sphi 0, %s202
      %s220 = sphi 0, %s220
      %s222 = sphi 0, %s220
      %s223 = sphi 0, %s222
      %s237 = sphi 0, %s223
      %s241 = sphi 0, %s241
      %s243 = sphi 0, %s241
      %s244 = sphi 0, %s243
      %s258 = sphi 0, %s244
      %s262 = sphi 0, %s262
      %s264 = sphi 0, %s262
      %s265 = sphi 0, %s264
      %s279 = sphi 0, %s265
      %s283 = sphi 0, %s283
      %s285 = sphi 0, %s283
      %s286 = sphi 0, %s285
      %s300 = sphi 0, %s286
      %s304 = sphi 0, %s304
      %s306 = sphi 0, %s304
      %s307 = sphi 0, %s306
      %s321 = sphi 0, %s307
      %s327 = sphi 0, %s329
      %s330 = sphi 0, %s327
      %s331 = sphi 0, %s330
      %s347 = sphi 0, %s331
    $region4: #{tpu_custom_call.1} parent=1 // loop_header_branch
      %27 = sbr.rel (%p25) target = $region8
    $region5: #{tpu_custom_call.1} parent=1 // loop_body
      %s29 = ssub.s32 %s24, 1
      %s30 = ssub.s32 %s24, 2
      %s31 = sadd.s32 %s24, 1
      %s32 = ssub.s32 %s24, %s31
      %p33 = scmp.eq.s32.totalorder %s32, 0
      %s35 = sadd.s32 %s34, 1
      %s36 = scalar_select %p33, %s34, %s35
      %p39 = pneg %p33
      %p40 = scmp.eq.s32.totalorder %s24, 1
      %p41 = por %p39, %p40
      %p42 = scmp.ne.s32.totalorder %s34, %s37
      %p43 = scmp.eq.s32.totalorder %s24, 0
      %p44 = por %p42, %p43
      %p45 = scmp.ne.s32.totalorder %s34, %s37
      %p46 = scmp.eq.s32.totalorder %s29, 1
      %p47 = por %p45, %p46
      %p48 = scmp.ne.s32.totalorder %s37, %s38
      %p49 = scmp.eq.s32.totalorder %s29, 0
      %p50 = por %p48, %p49
      %p51 = scmp.ne.s32.totalorder %s37, %s38
      %p52 = scmp.eq.s32.totalorder %s30, 1
      %p53 = por %p51, %p52
      %p55 = scmp.ne.s32.totalorder %s38, %s54
      %p56 = scmp.eq.s32.totalorder %s30, 0
      %p57 = por %p55, %p56
      %s58 = ssub.s32 %s24, %s31
      %p59 = scmp.eq.s32.totalorder %s58, 0
      %s61 = sadd.s32 %s60, 1
      %s62 = scalar_select %p59, %s60, %s61
      %p65 = pneg %p59
      %p66 = scmp.eq.s32.totalorder %s24, 1
      %p67 = por %p65, %p66
      %p68 = scmp.ne.s32.totalorder %s60, %s63
      %p69 = scmp.eq.s32.totalorder %s24, 0
      %p70 = por %p68, %p69
      %p71 = scmp.ne.s32.totalorder %s60, %s63
      %p72 = scmp.eq.s32.totalorder %s29, 1
      %p73 = por %p71, %p72
      %p74 = scmp.ne.s32.totalorder %s63, %s64
      %p75 = scmp.eq.s32.totalorder %s29, 0
      %p76 = por %p74, %p75
      %p77 = scmp.ne.s32.totalorder %s63, %s64
      %p78 = scmp.eq.s32.totalorder %s30, 1
      %p79 = por %p77, %p78
      %p81 = scmp.ne.s32.totalorder %s64, %s80
      %p82 = scmp.eq.s32.totalorder %s30, 0
      %p83 = por %p81, %p82
      %s84 = ssub.s32 %s24, %s31
      %p85 = scmp.eq.s32.totalorder %s84, 0
      %s87 = sadd.s32 %s86, 1
      %s88 = scalar_select %p85, %s86, %s87
      %p91 = pneg %p85
      %p92 = scmp.eq.s32.totalorder %s24, 1
      %p93 = por %p91, %p92
      %p94 = scmp.ne.s32.totalorder %s86, %s89
      %p95 = scmp.eq.s32.totalorder %s24, 0
      %p96 = por %p94, %p95
      %p97 = scmp.ne.s32.totalorder %s86, %s89
      %p98 = scmp.eq.s32.totalorder %s29, 1
      %p99 = por %p97, %p98
      %p100 = scmp.ne.s32.totalorder %s89, %s90
      %p101 = scmp.eq.s32.totalorder %s29, 0
      %p102 = por %p100, %p101
      %p103 = scmp.ne.s32.totalorder %s89, %s90
      %p104 = scmp.eq.s32.totalorder %s30, 1
      %p105 = por %p103, %p104
      %p107 = scmp.ne.s32.totalorder %s90, %s106
      %p108 = scmp.eq.s32.totalorder %s30, 0
      %p109 = por %p107, %p108
      %s110 = ssub.s32 %s24, %s31
      %p111 = scmp.eq.s32.totalorder %s110, 0
      %s113 = sadd.s32 %s112, 1
      %s114 = scalar_select %p111, %s112, %s113
      %p117 = pneg %p111
      %p118 = scmp.eq.s32.totalorder %s24, 1
      %p119 = por %p117, %p118
      %p120 = scmp.ne.s32.totalorder %s112, %s115
      %p121 = scmp.eq.s32.totalorder %s24, 0
      %p122 = por %p120, %p121
      %p123 = scmp.ne.s32.totalorder %s112, %s115
      %p124 = scmp.eq.s32.totalorder %s29, 1
      %p125 = por %p123, %p124
      %p126 = scmp.ne.s32.totalorder %s115, %s116
      %p127 = scmp.eq.s32.totalorder %s29, 0
      %p128 = por %p126, %p127
      %p129 = scmp.ne.s32.totalorder %s115, %s116
      %p130 = scmp.eq.s32.totalorder %s30, 1
      %p131 = por %p129, %p130
      %p133 = scmp.ne.s32.totalorder %s116, %s132
      %p134 = scmp.eq.s32.totalorder %s30, 0
      %p135 = por %p133, %p134
      %s137 = sadd.s32 %s136, 1
      %p140 = scmp.eq.s32.totalorder %s24, 1
      %p141 = scmp.ne.s32.totalorder %s136, %s138
      %p142 = scmp.eq.s32.totalorder %s24, 0
      %p143 = por %p141, %p142
      %p144 = scmp.ne.s32.totalorder %s136, %s138
      %p145 = scmp.eq.s32.totalorder %s29, 1
      %p146 = por %p144, %p145
      %p147 = scmp.ne.s32.totalorder %s138, %s139
      %p148 = scmp.eq.s32.totalorder %s29, 0
      %p149 = por %p147, %p148
      %p150 = scmp.ne.s32.totalorder %s138, %s139
      %p151 = scmp.eq.s32.totalorder %s30, 1
      %p152 = por %p150, %p151
      %p154 = scmp.ne.s32.totalorder %s139, %s153
      %p155 = scmp.eq.s32.totalorder %s30, 0
      %p156 = por %p154, %p155
      %s158 = sadd.s32 %s157, 1
      %p161 = scmp.eq.s32.totalorder %s24, 1
      %p162 = scmp.ne.s32.totalorder %s157, %s159
      %p163 = scmp.eq.s32.totalorder %s24, 0
      %p164 = por %p162, %p163
      %p165 = scmp.ne.s32.totalorder %s157, %s159
      %p166 = scmp.eq.s32.totalorder %s29, 1
      %p167 = por %p165, %p166
      %p168 = scmp.ne.s32.totalorder %s159, %s160
      %p169 = scmp.eq.s32.totalorder %s29, 0
      %p170 = por %p168, %p169
      %p171 = scmp.ne.s32.totalorder %s159, %s160
      %p172 = scmp.eq.s32.totalorder %s30, 1
      %p173 = por %p171, %p172
      %p175 = scmp.ne.s32.totalorder %s160, %s174
      %p176 = scmp.eq.s32.totalorder %s30, 0
      %p177 = por %p175, %p176
      %s179 = sadd.s32 %s178, 1
      %p182 = scmp.eq.s32.totalorder %s24, 1
      %p183 = scmp.ne.s32.totalorder %s178, %s180
      %p184 = scmp.eq.s32.totalorder %s24, 0
      %p185 = por %p183, %p184
      %p186 = scmp.ne.s32.totalorder %s178, %s180
      %p187 = scmp.eq.s32.totalorder %s29, 1
      %p188 = por %p186, %p187
      %p189 = scmp.ne.s32.totalorder %s180, %s181
      %p190 = scmp.eq.s32.totalorder %s29, 0
      %p191 = por %p189, %p190
      %p192 = scmp.ne.s32.totalorder %s180, %s181
      %p193 = scmp.eq.s32.totalorder %s30, 1
      %p194 = por %p192, %p193
      %p196 = scmp.ne.s32.totalorder %s181, %s195
      %p197 = scmp.eq.s32.totalorder %s30, 0
      %p198 = por %p196, %p197
      %s200 = sadd.s32 %s199, 1
      %p203 = scmp.eq.s32.totalorder %s24, 1
      %p204 = scmp.ne.s32.totalorder %s199, %s201
      %p205 = scmp.eq.s32.totalorder %s24, 0
      %p206 = por %p204, %p205
      %p207 = scmp.ne.s32.totalorder %s199, %s201
      %p208 = scmp.eq.s32.totalorder %s29, 1
      %p209 = por %p207, %p208
      %p210 = scmp.ne.s32.totalorder %s201, %s202
      %p211 = scmp.eq.s32.totalorder %s29, 0
      %p212 = por %p210, %p211
      %p213 = scmp.ne.s32.totalorder %s201, %s202
      %p214 = scmp.eq.s32.totalorder %s30, 1
      %p215 = por %p213, %p214
      %p217 = scmp.ne.s32.totalorder %s202, %s216
      %p218 = scmp.eq.s32.totalorder %s30, 0
      %p219 = por %p217, %p218
      %s221 = sadd.s32 %s220, 1
      %p224 = scmp.eq.s32.totalorder %s24, 1
      %p225 = scmp.ne.s32.totalorder %s220, %s222
      %p226 = scmp.eq.s32.totalorder %s24, 0
      %p227 = por %p225, %p226
      %p228 = scmp.ne.s32.totalorder %s220, %s222
      %p229 = scmp.eq.s32.totalorder %s29, 1
      %p230 = por %p228, %p229
      %p231 = scmp.ne.s32.totalorder %s222, %s223
      %p232 = scmp.eq.s32.totalorder %s29, 0
      %p233 = por %p231, %p232
      %p234 = scmp.ne.s32.totalorder %s222, %s223
      %p235 = scmp.eq.s32.totalorder %s30, 1
      %p236 = por %p234, %p235
      %p238 = scmp.ne.s32.totalorder %s223, %s237
      %p239 = scmp.eq.s32.totalorder %s30, 0
      %p240 = por %p238, %p239
      %s242 = sadd.s32 %s241, 1
      %p245 = scmp.eq.s32.totalorder %s24, 1
      %p246 = scmp.ne.s32.totalorder %s241, %s243
      %p247 = scmp.eq.s32.totalorder %s24, 0
      %p248 = por %p246, %p247
      %p249 = scmp.ne.s32.totalorder %s241, %s243
      %p250 = scmp.eq.s32.totalorder %s29, 1
      %p251 = por %p249, %p250
      %p252 = scmp.ne.s32.totalorder %s243, %s244
      %p253 = scmp.eq.s32.totalorder %s29, 0
      %p254 = por %p252, %p253
      %p255 = scmp.ne.s32.totalorder %s243, %s244
      %p256 = scmp.eq.s32.totalorder %s30, 1
      %p257 = por %p255, %p256
      %p259 = scmp.ne.s32.totalorder %s244, %s258
      %p260 = scmp.eq.s32.totalorder %s30, 0
      %p261 = por %p259, %p260
      %s263 = sadd.s32 %s262, 1
      %p266 = scmp.eq.s32.totalorder %s24, 1
      %p267 = scmp.ne.s32.totalorder %s262, %s264
      %p268 = scmp.eq.s32.totalorder %s24, 0
      %p269 = por %p267, %p268
      %p270 = scmp.ne.s32.totalorder %s262, %s264
      %p271 = scmp.eq.s32.totalorder %s29, 1
      %p272 = por %p270, %p271
      %p273 = scmp.ne.s32.totalorder %s264, %s265
      %p274 = scmp.eq.s32.totalorder %s29, 0
      %p275 = por %p273, %p274
      %p276 = scmp.ne.s32.totalorder %s264, %s265
      %p277 = scmp.eq.s32.totalorder %s30, 1
      %p278 = por %p276, %p277
      %p280 = scmp.ne.s32.totalorder %s265, %s279
      %p281 = scmp.eq.s32.totalorder %s30, 0
      %p282 = por %p280, %p281
      %s284 = sadd.s32 %s283, 1
      %p287 = scmp.eq.s32.totalorder %s24, 1
      %p288 = scmp.ne.s32.totalorder %s283, %s285
      %p289 = scmp.eq.s32.totalorder %s24, 0
      %p290 = por %p288, %p289
      %p291 = scmp.ne.s32.totalorder %s283, %s285
      %p292 = scmp.eq.s32.totalorder %s29, 1
      %p293 = por %p291, %p292
      %p294 = scmp.ne.s32.totalorder %s285, %s286
      %p295 = scmp.eq.s32.totalorder %s29, 0
      %p296 = por %p294, %p295
      %p297 = scmp.ne.s32.totalorder %s285, %s286
      %p298 = scmp.eq.s32.totalorder %s30, 1
      %p299 = por %p297, %p298
      %p301 = scmp.ne.s32.totalorder %s286, %s300
      %p302 = scmp.eq.s32.totalorder %s30, 0
      %p303 = por %p301, %p302
      %s305 = sadd.s32 %s304, 1
      %p308 = scmp.eq.s32.totalorder %s24, 1
      %p309 = scmp.ne.s32.totalorder %s304, %s306
      %p310 = scmp.eq.s32.totalorder %s24, 0
      %p311 = por %p309, %p310
      %p312 = scmp.ne.s32.totalorder %s304, %s306
      %p313 = scmp.eq.s32.totalorder %s29, 1
      %p314 = por %p312, %p313
      %p315 = scmp.ne.s32.totalorder %s306, %s307
      %p316 = scmp.eq.s32.totalorder %s29, 0
      %p317 = por %p315, %p316
      %p318 = scmp.ne.s32.totalorder %s306, %s307
      %p319 = scmp.eq.s32.totalorder %s30, 1
      %p320 = por %p318, %p319
      %p322 = scmp.ne.s32.totalorder %s307, %s321
      %p323 = scmp.eq.s32.totalorder %s30, 0
      %p324 = por %p322, %p323
      %s325 = ssub.s32 %s24, %s31
      %p326 = scmp.eq.s32.totalorder %s325, 0
      %s328 = sadd.s32 %s327, 1
      %s329 = scalar_select %p326, %s327, %s328
      %p332 = pneg %p326
      %p333 = scmp.eq.s32.totalorder %s24, 1
      %p334 = por %p332, %p333
      %p335 = scmp.ne.s32.totalorder %s327, %s330
      %p336 = scmp.eq.s32.totalorder %s24, 0
      %p337 = por %p335, %p336
      %p338 = scmp.ne.s32.totalorder %s327, %s330
      %p339 = scmp.eq.s32.totalorder %s29, 1
      %p340 = por %p338, %p339
      %p341 = scmp.ne.s32.totalorder %s330, %s331
      %p342 = scmp.eq.s32.totalorder %s29, 0
      %p343 = por %p341, %p342
      %p344 = scmp.ne.s32.totalorder %s330, %s331
      %p345 = scmp.eq.s32.totalorder %s30, 1
      %p346 = por %p344, %p345
      %p348 = scmp.ne.s32.totalorder %s331, %s347
      %p349 = scmp.eq.s32.totalorder %s30, 0
      %p350 = por %p348, %p349
      %p351 = scmp.le.s32.totalorder 1, %s24
      %p352 = scmp.lt.s32.totalorder %s24, 3
      %p353 = pnand %p351, %p352
      %p354 = pneg %p353
      // Predicated region
      $region9: #{tpu_custom_call.1} parent=5 // pred_check
        _
      $region10: #{tpu_custom_call.1} parent=5 // pred_check_branch
        %356 = sbr.rel (%p353) target = $region12
      $region11: #{tpu_custom_call.1} parent=5 // pred_region
        %s357 = ssub.s32 %s24, 1
        // Predicated region
        $region13: #{tpu_custom_call.1} parent=11 // pred_check
          %p358 = pneg %p149
        $region14: #{tpu_custom_call.1} parent=11 // pred_check_branch
          %360 = sbr.rel (%p358) target = $region16
        $region15: #{tpu_custom_call.1} parent=11 // pred_region
          _
        $region16: #{tpu_custom_call.1} parent=11 // pred_fallthru
          _
        // Predicated region
        $region17: #{tpu_custom_call.1} parent=11 // pred_check
          %p361 = pneg %p170
        $region18: #{tpu_custom_call.1} parent=11 // pred_check_branch
          %363 = sbr.rel (%p361) target = $region20
        $region19: #{tpu_custom_call.1} parent=11 // pred_region
          _
        $region20: #{tpu_custom_call.1} parent=11 // pred_fallthru
          _
        // Predicated region
        $region21: #{tpu_custom_call.1} parent=11 // pred_check
          %p364 = pneg %p191
        $region22: #{tpu_custom_call.1} parent=11 // pred_check_branch
          %366 = sbr.rel (%p364) target = $region24
        $region23: #{tpu_custom_call.1} parent=11 // pred_region
          _
        $region24: #{tpu_custom_call.1} parent=11 // pred_fallthru
          _
        // Predicated region
        $region25: #{tpu_custom_call.1} parent=11 // pred_check
          %p367 = pneg %p212
        $region26: #{tpu_custom_call.1} parent=11 // pred_check_branch
          %369 = sbr.rel (%p367) target = $region28
        $region27: #{tpu_custom_call.1} parent=11 // pred_region
          _
        $region28: #{tpu_custom_call.1} parent=11 // pred_fallthru
          _
        // Predicated region
        $region29: #{tpu_custom_call.1} parent=11 // pred_check
          %p370 = pneg %p233
        $region30: #{tpu_custom_call.1} parent=11 // pred_check_branch
          %372 = sbr.rel (%p370) target = $region32
        $region31: #{tpu_custom_call.1} parent=11 // pred_region
          _
        $region32: #{tpu_custom_call.1} parent=11 // pred_fallthru
          _
        // Predicated region
        $region33: #{tpu_custom_call.1} parent=11 // pred_check
          %p373 = pneg %p254
        $region34: #{tpu_custom_call.1} parent=11 // pred_check_branch
          %375 = sbr.rel (%p373) target = $region36
        $region35: #{tpu_custom_call.1} parent=11 // pred_region
          _
        $region36: #{tpu_custom_call.1} parent=11 // pred_fallthru
          _
        // Predicated region
        $region37: #{tpu_custom_call.1} parent=11 // pred_check
          %p376 = pneg %p275
        $region38: #{tpu_custom_call.1} parent=11 // pred_check_branch
          %378 = sbr.rel (%p376) target = $region40
        $region39: #{tpu_custom_call.1} parent=11 // pred_region
          _
        $region40: #{tpu_custom_call.1} parent=11 // pred_fallthru
          _
        // Predicated region
        $region41: #{tpu_custom_call.1} parent=11 // pred_check
          %p379 = pneg %p296
        $region42: #{tpu_custom_call.1} parent=11 // pred_check_branch
          %381 = sbr.rel (%p379) target = $region44
        $region43: #{tpu_custom_call.1} parent=11 // pred_region
          _
        $region44: #{tpu_custom_call.1} parent=11 // pred_fallthru
          _
        // Predicated region
        $region45: #{tpu_custom_call.1} parent=11 // pred_check
          %p382 = pneg %p317
        $region46: #{tpu_custom_call.1} parent=11 // pred_check_branch
          %384 = sbr.rel (%p382) target = $region48
        $region47: #{tpu_custom_call.1} parent=11 // pred_region
          _
        $region48: #{tpu_custom_call.1} parent=11 // pred_fallthru
          _
      $region12: #{tpu_custom_call.1} parent=5 // pred_fallthru
        _
      %p385 = scmp.lt.s32.totalorder %s24, 2
      // Predicated region
      $region49: #{tpu_custom_call.1} parent=5 // pred_check
        %p386 = pneg %p385
      $region50: #{tpu_custom_call.1} parent=5 // pred_check_branch
        %388 = sbr.rel (%p386) target = $region52
      $region51: #{tpu_custom_call.1} parent=5 // pred_region
        // Predicated region
        $region53: #{tpu_custom_call.1} parent=51 // pred_check
          %p389 = pneg %p44
        $region54: #{tpu_custom_call.1} parent=51 // pred_check_branch
          %391 = sbr.rel (%p389) target = $region56
        $region55: #{tpu_custom_call.1} parent=51 // pred_region
          %s392 = smul.u32 2, %s24
          %p393 = scmp.lt.s32.totalorder %s392, 3
          %s394 = scalar_select %p393, %s392, 3
          %s395 = smul.addr %s394, 4
          %s396 = scalar_lea.vmem %s0, %s395
          %s397 = smul.u32 2, %s24
        $region56: #{tpu_custom_call.1} parent=51 // pred_fallthru
          _
        // Predicated region
        $region57: #{tpu_custom_call.1} parent=51 // pred_check
          %p398 = pneg %p70
        $region58: #{tpu_custom_call.1} parent=51 // pred_check_branch
          %400 = sbr.rel (%p398) target = $region60
        $region59: #{tpu_custom_call.1} parent=51 // pred_region
          %s401 = smul.u32 2, %s24
          %p402 = scmp.lt.s32.totalorder %s401, 3
          %s403 = scalar_select %p402, %s401, 3
          %s404 = smul.addr %s403, 4
          %s405 = scalar_lea.vmem %s1, %s404
          %s406 = smul.u32 2, %s24
        $region60: #{tpu_custom_call.1} parent=51 // pred_fallthru
          _
        // Predicated region
        $region61: #{tpu_custom_call.1} parent=51 // pred_check
          %p407 = pneg %p96
        $region62: #{tpu_custom_call.1} parent=51 // pred_check_branch
          %409 = sbr.rel (%p407) target = $region64
        $region63: #{tpu_custom_call.1} parent=51 // pred_region
          %s410 = smul.u32 2, %s24
          %p411 = scmp.lt.s32.totalorder %s410, 3
          %s412 = scalar_select %p411, %s410, 3
          %s413 = smul.addr %s412, 16
          %s414 = smul.addr %s413, 8
          %s415 = scalar_lea.vmem %s2, %s414
          %s416 = smul.u32 2, %s24
        $region64: #{tpu_custom_call.1} parent=51 // pred_fallthru
          _
        // Predicated region
        $region65: #{tpu_custom_call.1} parent=51 // pred_check
          %p417 = pneg %p122
        $region66: #{tpu_custom_call.1} parent=51 // pred_check_branch
          %419 = sbr.rel (%p417) target = $region68
        $region67: #{tpu_custom_call.1} parent=51 // pred_region
          %s420 = smul.u32 2, %s24
          %p421 = scmp.lt.s32.totalorder %s420, 3
          %s422 = scalar_select %p421, %s420, 3
          %s423 = smul.addr %s422, 16
          %s424 = smul.addr %s423, 8
          %s425 = scalar_lea.vmem %s3, %s424
          %s426 = smul.u32 2, %s24
        $region68: #{tpu_custom_call.1} parent=51 // pred_fallthru
          _
      $region52: #{tpu_custom_call.1} parent=5 // pred_fallthru
        _
      %p427 = scmp.le.s32.totalorder 1, %s24
      %p428 = scmp.lt.s32.totalorder %s24, 3
      %p429 = pnand %p427, %p428
      %p430 = pneg %p429
      // Predicated region
      $region69: #{tpu_custom_call.1} parent=5 // pred_check
        _
      $region70: #{tpu_custom_call.1} parent=5 // pred_check_branch
        %432 = sbr.rel (%p429) target = $region72
      $region71: #{tpu_custom_call.1} parent=5 // pred_region
        %s433 = ssub.s32 %s24, 1
        %s434 = smul.u32 2, %s29
        %p435 = scmp.lt.s32.totalorder %s434, 3
        %s436 = scalar_select %p435, %s434, 3
        %s437 = smul.addr %s436, 4
        %s438 = scalar_lea.vmem %s0, %s437
        %p439 = pneg %p50
        %p440 = pneg %p47
        %s441 = smul.u32 2, %s29
        %p442 = scmp.lt.s32.totalorder %s441, 3
        %s443 = scalar_select %p442, %s441, 3
        %s444 = smul.addr %s443, 4
        %s445 = scalar_lea.vmem %s1, %s444
        %p446 = pneg %p76
        %p447 = pneg %p73
        %s448 = smul.u32 2, %s29
        %p449 = scmp.lt.s32.totalorder %s448, 3
        %s450 = scalar_select %p449, %s448, 3
        %s451 = smul.addr %s450, 16
        %s452 = smul.addr %s451, 8
        %s453 = scalar_lea.vmem %s2, %s452
        %p454 = pneg %p102
        %p455 = pneg %p99
        %s456 = smul.u32 2, %s29
        %p457 = scmp.lt.s32.totalorder %s456, 3
        %s458 = scalar_select %p457, %s456, 3
        %s459 = smul.addr %s458, 16
        %s460 = smul.addr %s459, 8
        %s461 = scalar_lea.vmem %s3, %s460
        %p462 = pneg %p128
        %p463 = pneg %p125
        %p464 = pneg %p149
        %p465 = pneg %p146
        %p466 = pneg %p170
        %p467 = pneg %p167
        %p468 = pneg %p191
        %p469 = pneg %p188
        %p470 = pneg %p212
        %p471 = pneg %p209
        %p472 = pneg %p233
        %p473 = pneg %p230
        %p474 = pneg %p254
        %p475 = pneg %p251
        %p476 = pneg %p275
        %p477 = pneg %p272
        %p478 = pneg %p296
        %p479 = pneg %p293
        %p480 = pneg %p317
        %p481 = pneg %p314
        %p482 = pneg %p343
        %p483 = pneg %p340
        %s484 = sand.u32 %s330, 1
        %s485 = scalar_lea.sflag [#allocation4], %s484
        %s486 = sand.u32 %s330, 1
        %s487 = smul.addr %s486, 2
        %s488 = scalar_lea.vmem [#allocation3], %s487
        %s489 = smul.u32 2, %s29
        %p490 = scmp.lt.s32.totalorder %s489, 3
        %s491 = scalar_select %p490, %s489, 3
        %s492 = smul.addr %s491, 4
        %s493 = scalar_lea.vmem %s0, %s492
        %s494 = smul.u32 2, %s29
        %s495 = smul.u32 2, %s29
        %p496 = scmp.lt.s32.totalorder %s495, 3
        %s497 = scalar_select %p496, %s495, 3
        %s498 = smul.addr %s497, 4
        %s499 = scalar_lea.vmem %s1, %s498
        %s500 = smul.u32 2, %s29
        %s501 = smul.u32 2, %s29
        %p502 = scmp.lt.s32.totalorder %s501, 3
        %s503 = scalar_select %p502, %s501, 3
        %s504 = smul.addr %s503, 16
        %s505 = smul.addr %s504, 8
        %s506 = scalar_lea.vmem %s2, %s505
        %s507 = smul.u32 2, %s29
        %s508 = smul.u32 2, %s29
        %p509 = scmp.lt.s32.totalorder %s508, 3
        %s510 = scalar_select %p509, %s508, 3
        %s511 = smul.addr %s510, 16
        %s512 = smul.addr %s511, 8
        %s513 = scalar_lea.vmem %s3, %s512
        %s514 = smul.u32 2, %s29
        %s515 = smul.u32 2, %s29
        %v517 = vld [vmem:[%s493] sm:$0xf]
        %v518 = vld [vmem:[%s493 + $0x4] sm:$0xf]
        %v519 = vld [vmem:[%s499] sm:$0xf]
        %v520 = vld [vmem:[%s499 + $0x4] sm:$0xf]
        %v521 = vld [vmem:[%s4] sm:$0x3]
        %v524 = vunpack.c.l.b16 %v517
        %v525 = vunpack.c.l.b16 %v518
        %v526 = vpack.c.b16 %v525, %v524
        %vm527 = vcmask 31744
        %v529 = vsel %vm527, %v526, 0
        %vm531 = vcmask 1041408
        %v533 = vsel %vm531, %v521, 0
        %535 = vmatprep.subr.bf16.mxu0 0
        %536 = vmatpush1.bf16.msra.mxu0 0
        %537 = vmatprep.subr.bf16.mxu0 0
        %538 = vmatpush1.bf16.msra.mxu0 0
        %539 = vmatprep.subr.bf16.mxu0 0
        %540 = vmatpush1.bf16.msra.mxu0 0
        %541 = vmatprep.subr.bf16.mxu0 0
        %542 = vmatpush1.bf16.msra.mxu0 0
        %543 = vmatprep.subr.bf16.mxu0 0
        %544 = vmatpush1.bf16.msra.mxu0 0
        %545 = vmatprep.subr.bf16.mxu0 0
        %546 = vmatpush1.bf16.msra.mxu0 0
        %547 = vmatprep.subr.bf16.mxu0 0
        %548 = vmatpush1.bf16.msra.mxu0 0
        %549 = vmatprep.subr.bf16.mxu0 0
        %550 = vmatpush1.bf16.msra.mxu0 %v533
        %551 = vmatprep.subr.bf16.mxu0 0
        %552 = vmatpush2.bf16.msra.mxu0 0
        %553 = vmatprep.subr.bf16.mxu0 0
        %554 = vmatpush2.bf16.msra.mxu0 0
        %555 = vmatprep.subr.bf16.mxu0 0
        %556 = vmatpush2.bf16.msra.mxu0 0
        %557 = vmatprep.subr.bf16.mxu0 0
        %558 = vmatpush2.bf16.msra.mxu0 0
        %559 = vmatprep.subr.bf16.mxu0 0
        %560 = vmatpush2.bf16.msra.mxu0 0
        %561 = vmatprep.subr.bf16.mxu0 0
        %562 = vmatpush2.bf16.msra.mxu0 0
        %563 = vmatprep.subr.bf16.mxu0 0
        %564 = vmatpush2.bf16.msra.mxu0 0
        %565 = vmatprep.subr.bf16.mxu0 0
        %566 = vmatpush2.bf16.msra.mxu0 0
        %567 = vmatprep.mubr.bf16.mxu0 0
        %568 = vmatmul.mubr.bf16.gmra.mxu0 %v529
        %v569 = vpop.f32.mrf.mxu0
        %v570 = vadd.f32 0.0, %v569
        %v571 = vpop.f32.mrf.mxu0
        %v572 = vpop.f32.mrf.mxu0
        %v573 = vadd.f32 0.0, %v572
        %v574 = vpop.f32.mrf.mxu0
        %575 = vdwg.mxu0
        %v576 = vpack.c.bf16 %v570, %v570
        %v577 = vpack.c.bf16 %v573, %v573
        %v578 = vld [vmem:[%s5] sm:$0x1]
        %v580 = vlaneseq
        %v581 = vshrl.u32 %v580, 7
        %v582 = vsub.s32 0, %v581
        %v583 = vrot.slane %v578, %v582
        %vm585 = vcmask 64512
        %v587 = vsel %vm585, %v519, 0
        %vm589 = vcmask 1043456
        %v591 = vsel %vm589, %v576, 0
        %593 = vmatprep.subr.bf16.mxu0 0
        %594 = vmatpush1.bf16.msra.mxu0 0
        %595 = vmatprep.subr.bf16.mxu0 0
        %596 = vmatpush1.bf16.msra.mxu0 0
        %597 = vmatprep.subr.bf16.mxu0 0
        %598 = vmatpush1.bf16.msra.mxu0 0
        %599 = vmatprep.subr.bf16.mxu0 0
        %600 = vmatpush1.bf16.msra.mxu0 0
        %601 = vmatprep.subr.bf16.mxu0 0
        %602 = vmatpush1.bf16.msra.mxu0 0
        %603 = vmatprep.subr.bf16.mxu0 0
        %604 = vmatpush1.bf16.msra.mxu0 0
        %605 = vmatprep.subr.bf16.mxu0 0
        %606 = vmatpush1.bf16.msra.mxu0 0
        %607 = vmatprep.subr.bf16.mxu0 0
        %608 = vmatpush1.bf16.msra.mxu0 %v591
        %609 = vmatprep.subr.bf16.mxu0 0
        %610 = vmatpush2.bf16.msra.mxu0 0
        %611 = vmatprep.subr.bf16.mxu0 0
        %612 = vmatpush2.bf16.msra.mxu0 0
        %613 = vmatprep.subr.bf16.mxu0 0
        %614 = vmatpush2.bf16.msra.mxu0 0
        %615 = vmatprep.subr.bf16.mxu0 0
        %616 = vmatpush2.bf16.msra.mxu0 0
        %617 = vmatprep.subr.bf16.mxu0 0
        %618 = vmatpush2.bf16.msra.mxu0 0
        %619 = vmatprep.subr.bf16.mxu0 0
        %620 = vmatpush2.bf16.msra.mxu0 0
        %621 = vmatprep.subr.bf16.mxu0 0
        %622 = vmatpush2.bf16.msra.mxu0 0
        %623 = vmatprep.subr.bf16.mxu0 0
        %624 = vmatpush2.bf16.msra.mxu0 0
        %625 = vmatprep.mubr.bf16.mxu0 0
        %626 = vmatmul.mubr.bf16.gmra.mxu0 %v587
        %v627 = vpop.f32.mrf.mxu0
        %v628 = vadd.f32 %v583, %v627
        %v629 = vpop.f32.mrf.mxu0
        %v630 = vpop.f32.mrf.mxu0
        %v631 = vpop.f32.mrf.mxu0
        %632 = vdwg.mxu0
        %v634 = vsel %vm585, %v520, 0
        %v637 = vsel %vm589, %v577, 0
        %639 = vmatprep.subr.bf16.mxu0 0
        %640 = vmatpush1.bf16.msra.mxu0 0
        %641 = vmatprep.subr.bf16.mxu0 0
        %642 = vmatpush1.bf16.msra.mxu0 0
        %643 = vmatprep.subr.bf16.mxu0 0
        %644 = vmatpush1.bf16.msra.mxu0 0
        %645 = vmatprep.subr.bf16.mxu0 0
        %646 = vmatpush1.bf16.msra.mxu0 0
        %647 = vmatprep.subr.bf16.mxu0 0
        %648 = vmatpush1.bf16.msra.mxu0 0
        %649 = vmatprep.subr.bf16.mxu0 0
        %650 = vmatpush1.bf16.msra.mxu0 0
        %651 = vmatprep.subr.bf16.mxu0 0
        %652 = vmatpush1.bf16.msra.mxu0 0
        %653 = vmatprep.subr.bf16.mxu0 0
        %654 = vmatpush1.bf16.msra.mxu0 %v637
        %655 = vmatprep.subr.bf16.mxu0 0
        %656 = vmatpush2.bf16.msra.mxu0 0
        %657 = vmatprep.subr.bf16.mxu0 0
        %658 = vmatpush2.bf16.msra.mxu0 0
        %659 = vmatprep.subr.bf16.mxu0 0
        %660 = vmatpush2.bf16.msra.mxu0 0
        %661 = vmatprep.subr.bf16.mxu0 0
        %662 = vmatpush2.bf16.msra.mxu0 0
        %663 = vmatprep.subr.bf16.mxu0 0
        %664 = vmatpush2.bf16.msra.mxu0 0
        %665 = vmatprep.subr.bf16.mxu0 0
        %666 = vmatpush2.bf16.msra.mxu0 0
        %667 = vmatprep.subr.bf16.mxu0 0
        %668 = vmatpush2.bf16.msra.mxu0 0
        %669 = vmatprep.subr.bf16.mxu0 0
        %670 = vmatpush2.bf16.msra.mxu0 0
        %671 = vmatprep.mubr.bf16.mxu0 0
        %672 = vmatmul.mubr.bf16.gmra.mxu0 %v634
        %v673 = vpop.f32.mrf.mxu0
        %v674 = vadd.f32 %v583, %v673
        %v675 = vpop.f32.mrf.mxu0
        %v676 = vpop.f32.mrf.mxu0
        %v677 = vpop.f32.mrf.mxu0
        %678 = vdwg.mxu0
        %v679 = vmax.f32 %v628, 0.0
        %v680 = vmax.f32 %v674, 0.0
        %v681 = vpack.c.bf16 %v680, %v679
        %v682 = vld [vmem:[%s6] sm:$0xf]
        %v683 = vld [vmem:[%s6 + $0x4] sm:$0xf]
        %v684 = vld [vmem:[%s6 + $0x8] sm:$0xf]
        %v685 = vld [vmem:[%s6 + $0xc] sm:$0xf]
        %v686 = vld [vmem:[%s6 + $0x10] sm:$0xf]
        %v687 = vld [vmem:[%s6 + $0x14] sm:$0xf]
        %v688 = vld [vmem:[%s6 + $0x18] sm:$0xf]
        %v689 = vld [vmem:[%s6 + $0x1c] sm:$0xf]
        %v690 = vld [vmem:[%s6 + $0x20] sm:$0xf]
        %v691 = vld [vmem:[%s6 + $0x24] sm:$0xf]
        %v692 = vld [vmem:[%s6 + $0x28] sm:$0xf]
        %v693 = vld [vmem:[%s6 + $0x2c] sm:$0xf]
        %v694 = vld [vmem:[%s6 + $0x30] sm:$0xf]
        %v695 = vld [vmem:[%s6 + $0x34] sm:$0xf]
        %v696 = vld [vmem:[%s6 + $0x38] sm:$0xf]
        %v697 = vld [vmem:[%s6 + $0x3c] sm:$0xf]
        %v714 = vunpack.c.l.b16 %v682
        %v715 = vunpack.c.l.b16 %v683
        %v716 = vunpack.c.l.b16 %v684
        %v717 = vunpack.c.l.b16 %v685
        %v718 = vunpack.c.l.b16 %v686
        %v719 = vunpack.c.l.b16 %v687
        %v720 = vunpack.c.l.b16 %v688
        %v721 = vunpack.c.l.b16 %v689
        %v722 = vunpack.c.l.b16 %v690
        %v723 = vunpack.c.l.b16 %v691
        %v724 = vunpack.c.l.b16 %v692
        %v725 = vunpack.c.l.b16 %v693
        %v726 = vunpack.c.l.b16 %v694
        %v727 = vunpack.c.l.b16 %v695
        %v728 = vunpack.c.l.b16 %v696
        %v729 = vunpack.c.l.b16 %v697
        %v730 = vpack.c.b16 %v715, %v714
        %v731 = vpack.c.b16 %v717, %v716
        %v732 = vpack.c.b16 %v719, %v718
        %v733 = vpack.c.b16 %v721, %v720
        %v734 = vpack.c.b16 %v723, %v722
        %v735 = vpack.c.b16 %v725, %v724
        %v736 = vpack.c.b16 %v727, %v726
        %v737 = vpack.c.b16 %v729, %v728
        %746 = vmatprep.subr.bf16.mxu0 0
        %747 = vmatpush1.bf16.msra.mxu0 %v737
        %748 = vmatprep.subr.bf16.mxu0 0
        %749 = vmatpush1.bf16.msra.mxu0 %v736
        %750 = vmatprep.subr.bf16.mxu0 0
        %751 = vmatpush1.bf16.msra.mxu0 %v735
        %752 = vmatprep.subr.bf16.mxu0 0
        %753 = vmatpush1.bf16.msra.mxu0 %v734
        %754 = vmatprep.subr.bf16.mxu0 0
        %755 = vmatpush1.bf16.msra.mxu0 %v733
        %756 = vmatprep.subr.bf16.mxu0 0
        %757 = vmatpush1.bf16.msra.mxu0 %v732
        %758 = vmatprep.subr.bf16.mxu0 0
        %759 = vmatpush1.bf16.msra.mxu0 %v731
        %760 = vmatprep.subr.bf16.mxu0 0
        %761 = vmatpush1.bf16.msra.mxu0 %v730
        %762 = vmatprep.subr.bf16.mxu0 0
        %763 = vmatpush2.bf16.msra.mxu0 0
        %764 = vmatprep.subr.bf16.mxu0 0
        %765 = vmatpush2.bf16.msra.mxu0 0
        %766 = vmatprep.subr.bf16.mxu0 0
        %767 = vmatpush2.bf16.msra.mxu0 0
        %768 = vmatprep.subr.bf16.mxu0 0
        %769 = vmatpush2.bf16.msra.mxu0 0
        %770 = vmatprep.subr.bf16.mxu0 0
        %771 = vmatpush2.bf16.msra.mxu0 0
        %772 = vmatprep.subr.bf16.mxu0 0
        %773 = vmatpush2.bf16.msra.mxu0 0
        %774 = vmatprep.subr.bf16.mxu0 0
        %775 = vmatpush2.bf16.msra.mxu0 0
        %776 = vmatprep.subr.bf16.mxu0 0
        %777 = vmatpush2.bf16.msra.mxu0 0
        %778 = vmatprep.mubr.bf16.mxu0 0
        %779 = vmatmul.mubr.bf16.gmra.mxu0 %v681
        %v780 = vpop.f32.mrf.mxu0
        %v781 = vadd.f32 0.0, %v780
        %v782 = vpop.f32.mrf.mxu0
        %v783 = vpop.f32.mrf.mxu0
        %v784 = vadd.f32 0.0, %v783
        %v785 = vpop.f32.mrf.mxu0
        %786 = vdwg.mxu0
        %v787 = vpack.c.bf16 %v781, %v781
        %v788 = vpack.c.bf16 %v784, %v784
        %v789 = vld [vmem:[%s7] sm:$0x1]
        %v791 = vlaneseq
        %v792 = vshrl.u32 %v791, 7
        %v793 = vsub.s32 0, %v792
        %v794 = vrot.slane %v789, %v793
        %v797 = vsel %vm589, %v787, 0
        %799 = vmatprep.subr.bf16.mxu0 0
        %800 = vmatpush1.bf16.msra.mxu0 0
        %801 = vmatprep.subr.bf16.mxu0 0
        %802 = vmatpush1.bf16.msra.mxu0 0
        %803 = vmatprep.subr.bf16.mxu0 0
        %804 = vmatpush1.bf16.msra.mxu0 0
        %805 = vmatprep.subr.bf16.mxu0 0
        %806 = vmatpush1.bf16.msra.mxu0 0
        %807 = vmatprep.subr.bf16.mxu0 0
        %808 = vmatpush1.bf16.msra.mxu0 0
        %809 = vmatprep.subr.bf16.mxu0 0
        %810 = vmatpush1.bf16.msra.mxu0 0
        %811 = vmatprep.subr.bf16.mxu0 0
        %812 = vmatpush1.bf16.msra.mxu0 0
        %813 = vmatprep.subr.bf16.mxu0 0
        %814 = vmatpush1.bf16.msra.mxu0 %v797
        %815 = vmatprep.subr.bf16.mxu0 0
        %816 = vmatpush2.bf16.msra.mxu0 0
        %817 = vmatprep.subr.bf16.mxu0 0
        %818 = vmatpush2.bf16.msra.mxu0 0
        %819 = vmatprep.subr.bf16.mxu0 0
        %820 = vmatpush2.bf16.msra.mxu0 0
        %821 = vmatprep.subr.bf16.mxu0 0
        %822 = vmatpush2.bf16.msra.mxu0 0
        %823 = vmatprep.subr.bf16.mxu0 0
        %824 = vmatpush2.bf16.msra.mxu0 0
        %825 = vmatprep.subr.bf16.mxu0 0
        %826 = vmatpush2.bf16.msra.mxu0 0
        %827 = vmatprep.subr.bf16.mxu0 0
        %828 = vmatpush2.bf16.msra.mxu0 0
        %829 = vmatprep.subr.bf16.mxu0 0
        %830 = vmatpush2.bf16.msra.mxu0 0
        %831 = vmatprep.mubr.bf16.mxu0 0
        %832 = vmatmul.mubr.bf16.gmra.mxu0 %v587
        %v833 = vpop.f32.mrf.mxu0
        %v834 = vadd.f32 %v794, %v833
        %v835 = vpop.f32.mrf.mxu0
        %v836 = vpop.f32.mrf.mxu0
        %v837 = vpop.f32.mrf.mxu0
        %838 = vdwg.mxu0
        %v840 = vsel %vm589, %v788, 0
        %842 = vmatprep.subr.bf16.mxu0 0
        %843 = vmatpush1.bf16.msra.mxu0 0
        %844 = vmatprep.subr.bf16.mxu0 0
        %845 = vmatpush1.bf16.msra.mxu0 0
        %846 = vmatprep.subr.bf16.mxu0 0
        %847 = vmatpush1.bf16.msra.mxu0 0
        %848 = vmatprep.subr.bf16.mxu0 0
        %849 = vmatpush1.bf16.msra.mxu0 0
        %850 = vmatprep.subr.bf16.mxu0 0
        %851 = vmatpush1.bf16.msra.mxu0 0
        %852 = vmatprep.subr.bf16.mxu0 0
        %853 = vmatpush1.bf16.msra.mxu0 0
        %854 = vmatprep.subr.bf16.mxu0 0
        %855 = vmatpush1.bf16.msra.mxu0 0
        %856 = vmatprep.subr.bf16.mxu0 0
        %857 = vmatpush1.bf16.msra.mxu0 %v840
        %858 = vmatprep.subr.bf16.mxu0 0
        %859 = vmatpush2.bf16.msra.mxu0 0
        %860 = vmatprep.subr.bf16.mxu0 0
        %861 = vmatpush2.bf16.msra.mxu0 0
        %862 = vmatprep.subr.bf16.mxu0 0
        %863 = vmatpush2.bf16.msra.mxu0 0
        %864 = vmatprep.subr.bf16.mxu0 0
        %865 = vmatpush2.bf16.msra.mxu0 0
        %866 = vmatprep.subr.bf16.mxu0 0
        %867 = vmatpush2.bf16.msra.mxu0 0
        %868 = vmatprep.subr.bf16.mxu0 0
        %869 = vmatpush2.bf16.msra.mxu0 0
        %870 = vmatprep.subr.bf16.mxu0 0
        %871 = vmatpush2.bf16.msra.mxu0 0
        %872 = vmatprep.subr.bf16.mxu0 0
        %873 = vmatpush2.bf16.msra.mxu0 0
        %874 = vmatprep.mubr.bf16.mxu0 0
        %875 = vmatmul.mubr.bf16.gmra.mxu0 %v634
        %v876 = vpop.f32.mrf.mxu0
        %v877 = vadd.f32 %v794, %v876
        %v878 = vpop.f32.mrf.mxu0
        %v879 = vpop.f32.mrf.mxu0
        %v880 = vpop.f32.mrf.mxu0
        %881 = vdwg.mxu0
        %v882 = vpack.c.bf16 %v834, %v834
        %v883 = vpack.c.bf16 %v877, %v877
        %v884 = vlaneseq
        %v885 = vand.u32 %v884, 127
        %v886 = vld [vmem:[%s506] sm:$0xff]
        %v887 = vld [vmem:[%s506 + $0x8] sm:$0xff]
        %v888 = vld [vmem:[%s506 + $0x10] sm:$0xff]
        %v889 = vld [vmem:[%s506 + $0x18] sm:$0xff]
        %v890 = vld [vmem:[%s506 + $0x20] sm:$0xff]
        %v891 = vld [vmem:[%s506 + $0x28] sm:$0xff]
        %v892 = vld [vmem:[%s506 + $0x30] sm:$0xff]
        %v893 = vld [vmem:[%s506 + $0x38] sm:$0xff]
        %v894 = vld [vmem:[%s506 + $0x40] sm:$0xff]
        %v895 = vld [vmem:[%s506 + $0x48] sm:$0xff]
        %v896 = vld [vmem:[%s506 + $0x50] sm:$0xff]
        %v897 = vld [vmem:[%s506 + $0x58] sm:$0xff]
        %v898 = vld [vmem:[%s506 + $0x60] sm:$0xff]
        %v899 = vld [vmem:[%s506 + $0x68] sm:$0xff]
        %v900 = vld [vmem:[%s506 + $0x70] sm:$0xff]
        %v901 = vld [vmem:[%s506 + $0x78] sm:$0xff]
        %v902 = vld [vmem:[%s506 + $0x80] sm:$0xff]
        %v903 = vld [vmem:[%s506 + $0x88] sm:$0xff]
        %v904 = vld [vmem:[%s506 + $0x90] sm:$0xff]
        %v905 = vld [vmem:[%s506 + $0x98] sm:$0xff]
        %v906 = vld [vmem:[%s506 + $0xa0] sm:$0xff]
        %v907 = vld [vmem:[%s506 + $0xa8] sm:$0xff]
        %v908 = vld [vmem:[%s506 + $0xb0] sm:$0xff]
        %v909 = vld [vmem:[%s506 + $0xb8] sm:$0xff]
        %v910 = vld [vmem:[%s506 + $0xc0] sm:$0xff]
        %v911 = vld [vmem:[%s506 + $0xc8] sm:$0xff]
        %v912 = vld [vmem:[%s506 + $0xd0] sm:$0xff]
        %v913 = vld [vmem:[%s506 + $0xd8] sm:$0xff]
        %v914 = vld [vmem:[%s506 + $0xe0] sm:$0xff]
        %v915 = vld [vmem:[%s506 + $0xe8] sm:$0xff]
        %v916 = vld [vmem:[%s506 + $0xf0] sm:$0xff]
        %v917 = vld [vmem:[%s506 + $0xf8] sm:$0xff]
        %918 = vset.pattern.permute.xlu0 0
        %919 = vperm.xlu0 %918, %v886
        %v920 = vpop.permute.xlu0 %919
        %921 = vset.pattern.permute.xlu0 0
        %922 = vperm.xlu0 %921, %v887
        %v923 = vpop.permute.xlu0 %922
        %924 = vset.pattern.permute.xlu0 0
        %925 = vperm.xlu0 %924, %v888
        %v926 = vpop.permute.xlu0 %925
        %927 = vset.pattern.permute.xlu0 0
        %928 = vperm.xlu0 %927, %v889
        %v929 = vpop.permute.xlu0 %928
        %930 = vset.pattern.permute.xlu0 0
        %931 = vperm.xlu0 %930, %v890
        %v932 = vpop.permute.xlu0 %931
        %933 = vset.pattern.permute.xlu0 0
        %934 = vperm.xlu0 %933, %v891
        %v935 = vpop.permute.xlu0 %934
        %936 = vset.pattern.permute.xlu0 0
        %937 = vperm.xlu0 %936, %v892
        %v938 = vpop.permute.xlu0 %937
        %939 = vset.pattern.permute.xlu0 0
        %940 = vperm.xlu0 %939, %v893
        %v941 = vpop.permute.xlu0 %940
        %942 = vset.pattern.permute.xlu0 0
        %943 = vperm.xlu0 %942, %v894
        %v944 = vpop.permute.xlu0 %943
        %945 = vset.pattern.permute.xlu0 0
        %946 = vperm.xlu0 %945, %v895
        %v947 = vpop.permute.xlu0 %946
        %948 = vset.pattern.permute.xlu0 0
        %949 = vperm.xlu0 %948, %v896
        %v950 = vpop.permute.xlu0 %949
        %951 = vset.pattern.permute.xlu0 0
        %952 = vperm.xlu0 %951, %v897
        %v953 = vpop.permute.xlu0 %952
        %954 = vset.pattern.permute.xlu0 0
        %955 = vperm.xlu0 %954, %v898
        %v956 = vpop.permute.xlu0 %955
        %957 = vset.pattern.permute.xlu0 0
        %958 = vperm.xlu0 %957, %v899
        %v959 = vpop.permute.xlu0 %958
        %960 = vset.pattern.permute.xlu0 0
        %961 = vperm.xlu0 %960, %v900
        %v962 = vpop.permute.xlu0 %961
        %963 = vset.pattern.permute.xlu0 0
        %964 = vperm.xlu0 %963, %v901
        %v965 = vpop.permute.xlu0 %964
        %966 = vset.pattern.permute.xlu0 0
        %967 = vperm.xlu0 %966, %v902
        %v968 = vpop.permute.xlu0 %967
        %969 = vset.pattern.permute.xlu0 0
        %970 = vperm.xlu0 %969, %v903
        %v971 = vpop.permute.xlu0 %970
        %972 = vset.pattern.permute.xlu0 0
        %973 = vperm.xlu0 %972, %v904
        %v974 = vpop.permute.xlu0 %973
        %975 = vset.pattern.permute.xlu0 0
        %976 = vperm.xlu0 %975, %v905
        %v977 = vpop.permute.xlu0 %976
        %978 = vset.pattern.permute.xlu0 0
        %979 = vperm.xlu0 %978, %v906
        %v980 = vpop.permute.xlu0 %979
        %981 = vset.pattern.permute.xlu0 0
        %982 = vperm.xlu0 %981, %v907
        %v983 = vpop.permute.xlu0 %982
        %984 = vset.pattern.permute.xlu0 0
        %985 = vperm.xlu0 %984, %v908
        %v986 = vpop.permute.xlu0 %985
        %987 = vset.pattern.permute.xlu0 0
        %988 = vperm.xlu0 %987, %v909
        %v989 = vpop.permute.xlu0 %988
        %990 = vset.pattern.permute.xlu0 0
        %991 = vperm.xlu0 %990, %v910
        %v992 = vpop.permute.xlu0 %991
        %993 = vset.pattern.permute.xlu0 0
        %994 = vperm.xlu0 %993, %v911
        %v995 = vpop.permute.xlu0 %994
        %996 = vset.pattern.permute.xlu0 0
        %997 = vperm.xlu0 %996, %v912
        %v998 = vpop.permute.xlu0 %997
        %999 = vset.pattern.permute.xlu0 0
        %1000 = vperm.xlu0 %999, %v913
        %v1001 = vpop.permute.xlu0 %1000
        %1002 = vset.pattern.permute.xlu0 0
        %1003 = vperm.xlu0 %1002, %v914
        %v1004 = vpop.permute.xlu0 %1003
        %1005 = vset.pattern.permute.xlu0 0
        %1006 = vperm.xlu0 %1005, %v915
        %v1007 = vpop.permute.xlu0 %1006
        %1008 = vset.pattern.permute.xlu0 0
        %1009 = vperm.xlu0 %1008, %v916
        %v1010 = vpop.permute.xlu0 %1009
        %1011 = vset.pattern.permute.xlu0 0
        %1012 = vperm.xlu0 %1011, %v917
        %v1013 = vpop.permute.xlu0 %1012
        %vm1014 = vcmp.eq.s32.totalorder %v885, %v920
        %vm1015 = vcmp.eq.s32.totalorder %v885, %v923
        %vm1016 = vcmp.eq.s32.totalorder %v885, %v926
        %vm1017 = vcmp.eq.s32.totalorder %v885, %v929
        %vm1018 = vcmp.eq.s32.totalorder %v885, %v932
        %vm1019 = vcmp.eq.s32.totalorder %v885, %v935
        %vm1020 = vcmp.eq.s32.totalorder %v885, %v938
        %vm1021 = vcmp.eq.s32.totalorder %v885, %v941
        %vm1022 = vcmp.eq.s32.totalorder %v885, %v944
        %vm1023 = vcmp.eq.s32.totalorder %v885, %v947
        %vm1024 = vcmp.eq.s32.totalorder %v885, %v950
        %vm1025 = vcmp.eq.s32.totalorder %v885, %v953
        %vm1026 = vcmp.eq.s32.totalorder %v885, %v956
        %vm1027 = vcmp.eq.s32.totalorder %v885, %v959
        %vm1028 = vcmp.eq.s32.totalorder %v885, %v962
        %vm1029 = vcmp.eq.s32.totalorder %v885, %v965
        %vm1030 = vcmp.eq.s32.totalorder %v885, %v968
        %vm1031 = vcmp.eq.s32.totalorder %v885, %v971
        %vm1032 = vcmp.eq.s32.totalorder %v885, %v974
        %vm1033 = vcmp.eq.s32.totalorder %v885, %v977
        %vm1034 = vcmp.eq.s32.totalorder %v885, %v980
        %vm1035 = vcmp.eq.s32.totalorder %v885, %v983
        %vm1036 = vcmp.eq.s32.totalorder %v885, %v986
        %vm1037 = vcmp.eq.s32.totalorder %v885, %v989
        %vm1038 = vcmp.eq.s32.totalorder %v885, %v992
        %vm1039 = vcmp.eq.s32.totalorder %v885, %v995
        %vm1040 = vcmp.eq.s32.totalorder %v885, %v998
        %vm1041 = vcmp.eq.s32.totalorder %v885, %v1001
        %vm1042 = vcmp.eq.s32.totalorder %v885, %v1004
        %vm1043 = vcmp.eq.s32.totalorder %v885, %v1007
        %vm1044 = vcmp.eq.s32.totalorder %v885, %v1010
        %vm1045 = vcmp.eq.s32.totalorder %v885, %v1013
        %v1046 = vsel %vm1014, 1, 0
        %v1047 = vsel %vm1015, 1, 0
        %v1048 = vsel %vm1016, 1, 0
        %v1049 = vsel %vm1017, 1, 0
        %v1050 = vsel %vm1018, 1, 0
        %v1051 = vsel %vm1019, 1, 0
        %v1052 = vsel %vm1020, 1, 0
        %v1053 = vsel %vm1021, 1, 0
        %v1054 = vsel %vm1022, 1, 0
        %v1055 = vsel %vm1023, 1, 0
        %v1056 = vsel %vm1024, 1, 0
        %v1057 = vsel %vm1025, 1, 0
        %v1058 = vsel %vm1026, 1, 0
        %v1059 = vsel %vm1027, 1, 0
        %v1060 = vsel %vm1028, 1, 0
        %v1061 = vsel %vm1029, 1, 0
        %v1062 = vsel %vm1030, 1, 0
        %v1063 = vsel %vm1031, 1, 0
        %v1064 = vsel %vm1032, 1, 0
        %v1065 = vsel %vm1033, 1, 0
        %v1066 = vsel %vm1034, 1, 0
        %v1067 = vsel %vm1035, 1, 0
        %v1068 = vsel %vm1036, 1, 0
        %v1069 = vsel %vm1037, 1, 0
        %v1070 = vsel %vm1038, 1, 0
        %v1071 = vsel %vm1039, 1, 0
        %v1072 = vsel %vm1040, 1, 0
        %v1073 = vsel %vm1041, 1, 0
        %v1074 = vsel %vm1042, 1, 0
        %v1075 = vsel %vm1043, 1, 0
        %v1076 = vsel %vm1044, 1, 0
        %v1077 = vsel %vm1045, 1, 0
        %v1078 = vcvt.s32.f32 %v1046
        %v1079 = vcvt.s32.f32 %v1047
        %v1080 = vcvt.s32.f32 %v1048
        %v1081 = vcvt.s32.f32 %v1049
        %v1082 = vcvt.s32.f32 %v1050
        %v1083 = vcvt.s32.f32 %v1051
        %v1084 = vcvt.s32.f32 %v1052
        %v1085 = vcvt.s32.f32 %v1053
        %v1086 = vcvt.s32.f32 %v1054
        %v1087 = vcvt.s32.f32 %v1055
        %v1088 = vcvt.s32.f32 %v1056
        %v1089 = vcvt.s32.f32 %v1057
        %v1090 = vcvt.s32.f32 %v1058
        %v1091 = vcvt.s32.f32 %v1059
        %v1092 = vcvt.s32.f32 %v1060
        %v1093 = vcvt.s32.f32 %v1061
        %v1094 = vcvt.s32.f32 %v1062
        %v1095 = vcvt.s32.f32 %v1063
        %v1096 = vcvt.s32.f32 %v1064
        %v1097 = vcvt.s32.f32 %v1065
        %v1098 = vcvt.s32.f32 %v1066
        %v1099 = vcvt.s32.f32 %v1067
        %v1100 = vcvt.s32.f32 %v1068
        %v1101 = vcvt.s32.f32 %v1069
        %v1102 = vcvt.s32.f32 %v1070
        %v1103 = vcvt.s32.f32 %v1071
        %v1104 = vcvt.s32.f32 %v1072
        %v1105 = vcvt.s32.f32 %v1073
        %v1106 = vcvt.s32.f32 %v1074
        %v1107 = vcvt.s32.f32 %v1075
        %v1108 = vcvt.s32.f32 %v1076
        %v1109 = vcvt.s32.f32 %v1077
        %v1110 = vpack.c.bf16 %v1079, %v1078
        %v1111 = vpack.c.bf16 %v1081, %v1080
        %v1112 = vpack.c.bf16 %v1083, %v1082
        %v1113 = vpack.c.bf16 %v1085, %v1084
        %v1114 = vpack.c.bf16 %v1087, %v1086
        %v1115 = vpack.c.bf16 %v1089, %v1088
        %v1116 = vpack.c.bf16 %v1091, %v1090
        %v1117 = vpack.c.bf16 %v1093, %v1092
        %v1118 = vpack.c.bf16 %v1095, %v1094
        %v1119 = vpack.c.bf16 %v1097, %v1096
        %v1120 = vpack.c.bf16 %v1099, %v1098
        %v1121 = vpack.c.bf16 %v1101, %v1100
        %v1122 = vpack.c.bf16 %v1103, %v1102
        %v1123 = vpack.c.bf16 %v1105, %v1104
        %v1124 = vpack.c.bf16 %v1107, %v1106
        %v1125 = vpack.c.bf16 %v1109, %v1108
        %v1126 = vld [vmem:[%s513] sm:$0xff]
        %v1127 = vld [vmem:[%s513 + $0x8] sm:$0xff]
        %v1128 = vld [vmem:[%s513 + $0x10] sm:$0xff]
        %v1129 = vld [vmem:[%s513 + $0x18] sm:$0xff]
        %v1130 = vld [vmem:[%s513 + $0x20] sm:$0xff]
        %v1131 = vld [vmem:[%s513 + $0x28] sm:$0xff]
        %v1132 = vld [vmem:[%s513 + $0x30] sm:$0xff]
        %v1133 = vld [vmem:[%s513 + $0x38] sm:$0xff]
        %v1134 = vld [vmem:[%s513 + $0x40] sm:$0xff]
        %v1135 = vld [vmem:[%s513 + $0x48] sm:$0xff]
        %v1136 = vld [vmem:[%s513 + $0x50] sm:$0xff]
        %v1137 = vld [vmem:[%s513 + $0x58] sm:$0xff]
        %v1138 = vld [vmem:[%s513 + $0x60] sm:$0xff]
        %v1139 = vld [vmem:[%s513 + $0x68] sm:$0xff]
        %v1140 = vld [vmem:[%s513 + $0x70] sm:$0xff]
        %v1141 = vld [vmem:[%s513 + $0x78] sm:$0xff]
        %v1142 = vld [vmem:[%s513 + $0x80] sm:$0xff]
        %v1143 = vld [vmem:[%s513 + $0x88] sm:$0xff]
        %v1144 = vld [vmem:[%s513 + $0x90] sm:$0xff]
        %v1145 = vld [vmem:[%s513 + $0x98] sm:$0xff]
        %v1146 = vld [vmem:[%s513 + $0xa0] sm:$0xff]
        %v1147 = vld [vmem:[%s513 + $0xa8] sm:$0xff]
        %v1148 = vld [vmem:[%s513 + $0xb0] sm:$0xff]
        %v1149 = vld [vmem:[%s513 + $0xb8] sm:$0xff]
        %v1150 = vld [vmem:[%s513 + $0xc0] sm:$0xff]
        %v1151 = vld [vmem:[%s513 + $0xc8] sm:$0xff]
        %v1152 = vld [vmem:[%s513 + $0xd0] sm:$0xff]
        %v1153 = vld [vmem:[%s513 + $0xd8] sm:$0xff]
        %v1154 = vld [vmem:[%s513 + $0xe0] sm:$0xff]
        %v1155 = vld [vmem:[%s513 + $0xe8] sm:$0xff]
        %v1156 = vld [vmem:[%s513 + $0xf0] sm:$0xff]
        %v1157 = vld [vmem:[%s513 + $0xf8] sm:$0xff]
        %1158 = vset.pattern.permute.xlu0 0
        %1159 = vperm.xlu0 %1158, %v1126
        %v1160 = vpop.permute.xlu0 %1159
        %1161 = vset.pattern.permute.xlu0 0
        %1162 = vperm.xlu0 %1161, %v1127
        %v1163 = vpop.permute.xlu0 %1162
        %1164 = vset.pattern.permute.xlu0 0
        %1165 = vperm.xlu0 %1164, %v1128
        %v1166 = vpop.permute.xlu0 %1165
        %1167 = vset.pattern.permute.xlu0 0
        %1168 = vperm.xlu0 %1167, %v1129
        %v1169 = vpop.permute.xlu0 %1168
        %1170 = vset.pattern.permute.xlu0 0
        %1171 = vperm.xlu0 %1170, %v1130
        %v1172 = vpop.permute.xlu0 %1171
        %1173 = vset.pattern.permute.xlu0 0
        %1174 = vperm.xlu0 %1173, %v1131
        %v1175 = vpop.permute.xlu0 %1174
        %1176 = vset.pattern.permute.xlu0 0
        %1177 = vperm.xlu0 %1176, %v1132
        %v1178 = vpop.permute.xlu0 %1177
        %1179 = vset.pattern.permute.xlu0 0
        %1180 = vperm.xlu0 %1179, %v1133
        %v1181 = vpop.permute.xlu0 %1180
        %1182 = vset.pattern.permute.xlu0 0
        %1183 = vperm.xlu0 %1182, %v1134
        %v1184 = vpop.permute.xlu0 %1183
        %1185 = vset.pattern.permute.xlu0 0
        %1186 = vperm.xlu0 %1185, %v1135
        %v1187 = vpop.permute.xlu0 %1186
        %1188 = vset.pattern.permute.xlu0 0
        %1189 = vperm.xlu0 %1188, %v1136
        %v1190 = vpop.permute.xlu0 %1189
        %1191 = vset.pattern.permute.xlu0 0
        %1192 = vperm.xlu0 %1191, %v1137
        %v1193 = vpop.permute.xlu0 %1192
        %1194 = vset.pattern.permute.xlu0 0
        %1195 = vperm.xlu0 %1194, %v1138
        %v1196 = vpop.permute.xlu0 %1195
        %1197 = vset.pattern.permute.xlu0 0
        %1198 = vperm.xlu0 %1197, %v1139
        %v1199 = vpop.permute.xlu0 %1198
        %1200 = vset.pattern.permute.xlu0 0
        %1201 = vperm.xlu0 %1200, %v1140
        %v1202 = vpop.permute.xlu0 %1201
        %1203 = vset.pattern.permute.xlu0 0
        %1204 = vperm.xlu0 %1203, %v1141
        %v1205 = vpop.permute.xlu0 %1204
        %1206 = vset.pattern.permute.xlu0 0
        %1207 = vperm.xlu0 %1206, %v1142
        %v1208 = vpop.permute.xlu0 %1207
        %1209 = vset.pattern.permute.xlu0 0
        %1210 = vperm.xlu0 %1209, %v1143
        %v1211 = vpop.permute.xlu0 %1210
        %1212 = vset.pattern.permute.xlu0 0
        %1213 = vperm.xlu0 %1212, %v1144
        %v1214 = vpop.permute.xlu0 %1213
        %1215 = vset.pattern.permute.xlu0 0
        %1216 = vperm.xlu0 %1215, %v1145
        %v1217 = vpop.permute.xlu0 %1216
        %1218 = vset.pattern.permute.xlu0 0
        %1219 = vperm.xlu0 %1218, %v1146
        %v1220 = vpop.permute.xlu0 %1219
        %1221 = vset.pattern.permute.xlu0 0
        %1222 = vperm.xlu0 %1221, %v1147
        %v1223 = vpop.permute.xlu0 %1222
        %1224 = vset.pattern.permute.xlu0 0
        %1225 = vperm.xlu0 %1224, %v1148
        %v1226 = vpop.permute.xlu0 %1225
        %1227 = vset.pattern.permute.xlu0 0
        %1228 = vperm.xlu0 %1227, %v1149
        %v1229 = vpop.permute.xlu0 %1228
        %1230 = vset.pattern.permute.xlu0 0
        %1231 = vperm.xlu0 %1230, %v1150
        %v1232 = vpop.permute.xlu0 %1231
        %1233 = vset.pattern.permute.xlu0 0
        %1234 = vperm.xlu0 %1233, %v1151
        %v1235 = vpop.permute.xlu0 %1234
        %1236 = vset.pattern.permute.xlu0 0
        %1237 = vperm.xlu0 %1236, %v1152
        %v1238 = vpop.permute.xlu0 %1237
        %1239 = vset.pattern.permute.xlu0 0
        %1240 = vperm.xlu0 %1239, %v1153
        %v1241 = vpop.permute.xlu0 %1240
        %1242 = vset.pattern.permute.xlu0 0
        %1243 = vperm.xlu0 %1242, %v1154
        %v1244 = vpop.permute.xlu0 %1243
        %1245 = vset.pattern.permute.xlu0 0
        %1246 = vperm.xlu0 %1245, %v1155
        %v1247 = vpop.permute.xlu0 %1246
        %1248 = vset.pattern.permute.xlu0 0
        %1249 = vperm.xlu0 %1248, %v1156
        %v1250 = vpop.permute.xlu0 %1249
        %1251 = vset.pattern.permute.xlu0 0
        %1252 = vperm.xlu0 %1251, %v1157
        %v1253 = vpop.permute.xlu0 %1252
        %vm1254 = vcmp.eq.s32.totalorder %v885, %v1160
        %vm1255 = vcmp.eq.s32.totalorder %v885, %v1163
        %vm1256 = vcmp.eq.s32.totalorder %v885, %v1166
        %vm1257 = vcmp.eq.s32.totalorder %v885, %v1169
        %vm1258 = vcmp.eq.s32.totalorder %v885, %v1172
        %vm1259 = vcmp.eq.s32.totalorder %v885, %v1175
        %vm1260 = vcmp.eq.s32.totalorder %v885, %v1178
        %vm1261 = vcmp.eq.s32.totalorder %v885, %v1181
        %vm1262 = vcmp.eq.s32.totalorder %v885, %v1184
        %vm1263 = vcmp.eq.s32.totalorder %v885, %v1187
        %vm1264 = vcmp.eq.s32.totalorder %v885, %v1190
        %vm1265 = vcmp.eq.s32.totalorder %v885, %v1193
        %vm1266 = vcmp.eq.s32.totalorder %v885, %v1196
        %vm1267 = vcmp.eq.s32.totalorder %v885, %v1199
        %vm1268 = vcmp.eq.s32.totalorder %v885, %v1202
        %vm1269 = vcmp.eq.s32.totalorder %v885, %v1205
        %vm1270 = vcmp.eq.s32.totalorder %v885, %v1208
        %vm1271 = vcmp.eq.s32.totalorder %v885, %v1211
        %vm1272 = vcmp.eq.s32.totalorder %v885, %v1214
        %vm1273 = vcmp.eq.s32.totalorder %v885, %v1217
        %vm1274 = vcmp.eq.s32.totalorder %v885, %v1220
        %vm1275 = vcmp.eq.s32.totalorder %v885, %v1223
        %vm1276 = vcmp.eq.s32.totalorder %v885, %v1226
        %vm1277 = vcmp.eq.s32.totalorder %v885, %v1229
        %vm1278 = vcmp.eq.s32.totalorder %v885, %v1232
        %vm1279 = vcmp.eq.s32.totalorder %v885, %v1235
        %vm1280 = vcmp.eq.s32.totalorder %v885, %v1238
        %vm1281 = vcmp.eq.s32.totalorder %v885, %v1241
        %vm1282 = vcmp.eq.s32.totalorder %v885, %v1244
        %vm1283 = vcmp.eq.s32.totalorder %v885, %v1247
        %vm1284 = vcmp.eq.s32.totalorder %v885, %v1250
        %vm1285 = vcmp.eq.s32.totalorder %v885, %v1253
        %v1286 = vsel %vm1254, 1, 0
        %v1287 = vsel %vm1255, 1, 0
        %v1288 = vsel %vm1256, 1, 0
        %v1289 = vsel %vm1257, 1, 0
        %v1290 = vsel %vm1258, 1, 0
        %v1291 = vsel %vm1259, 1, 0
        %v1292 = vsel %vm1260, 1, 0
        %v1293 = vsel %vm1261, 1, 0
        %v1294 = vsel %vm1262, 1, 0
        %v1295 = vsel %vm1263, 1, 0
        %v1296 = vsel %vm1264, 1, 0
        %v1297 = vsel %vm1265, 1, 0
        %v1298 = vsel %vm1266, 1, 0
        %v1299 = vsel %vm1267, 1, 0
        %v1300 = vsel %vm1268, 1, 0
        %v1301 = vsel %vm1269, 1, 0
        %v1302 = vsel %vm1270, 1, 0
        %v1303 = vsel %vm1271, 1, 0
        %v1304 = vsel %vm1272, 1, 0
        %v1305 = vsel %vm1273, 1, 0
        %v1306 = vsel %vm1274, 1, 0
        %v1307 = vsel %vm1275, 1, 0
        %v1308 = vsel %vm1276, 1, 0
        %v1309 = vsel %vm1277, 1, 0
        %v1310 = vsel %vm1278, 1, 0
        %v1311 = vsel %vm1279, 1, 0
        %v1312 = vsel %vm1280, 1, 0
        %v1313 = vsel %vm1281, 1, 0
        %v1314 = vsel %vm1282, 1, 0
        %v1315 = vsel %vm1283, 1, 0
        %v1316 = vsel %vm1284, 1, 0
        %v1317 = vsel %vm1285, 1, 0
        %v1318 = vcvt.s32.f32 %v1286
        %v1319 = vcvt.s32.f32 %v1287
        %v1320 = vcvt.s32.f32 %v1288
        %v1321 = vcvt.s32.f32 %v1289
        %v1322 = vcvt.s32.f32 %v1290
        %v1323 = vcvt.s32.f32 %v1291
        %v1324 = vcvt.s32.f32 %v1292
        %v1325 = vcvt.s32.f32 %v1293
        %v1326 = vcvt.s32.f32 %v1294
        %v1327 = vcvt.s32.f32 %v1295
        %v1328 = vcvt.s32.f32 %v1296
        %v1329 = vcvt.s32.f32 %v1297
        %v1330 = vcvt.s32.f32 %v1298
        %v1331 = vcvt.s32.f32 %v1299
        %v1332 = vcvt.s32.f32 %v1300
        %v1333 = vcvt.s32.f32 %v1301
        %v1334 = vcvt.s32.f32 %v1302
        %v1335 = vcvt.s32.f32 %v1303
        %v1336 = vcvt.s32.f32 %v1304
        %v1337 = vcvt.s32.f32 %v1305
        %v1338 = vcvt.s32.f32 %v1306
        %v1339 = vcvt.s32.f32 %v1307
        %v1340 = vcvt.s32.f32 %v1308
        %v1341 = vcvt.s32.f32 %v1309
        %v1342 = vcvt.s32.f32 %v1310
        %v1343 = vcvt.s32.f32 %v1311
        %v1344 = vcvt.s32.f32 %v1312
        %v1345 = vcvt.s32.f32 %v1313
        %v1346 = vcvt.s32.f32 %v1314
        %v1347 = vcvt.s32.f32 %v1315
        %v1348 = vcvt.s32.f32 %v1316
        %v1349 = vcvt.s32.f32 %v1317
        %v1350 = vpack.c.bf16 %v1319, %v1318
        %v1351 = vpack.c.bf16 %v1321, %v1320
        %v1352 = vpack.c.bf16 %v1323, %v1322
        %v1353 = vpack.c.bf16 %v1325, %v1324
        %v1354 = vpack.c.bf16 %v1327, %v1326
        %v1355 = vpack.c.bf16 %v1329, %v1328
        %v1356 = vpack.c.bf16 %v1331, %v1330
        %v1357 = vpack.c.bf16 %v1333, %v1332
        %v1358 = vpack.c.bf16 %v1335, %v1334
        %v1359 = vpack.c.bf16 %v1337, %v1336
        %v1360 = vpack.c.bf16 %v1339, %v1338
        %v1361 = vpack.c.bf16 %v1341, %v1340
        %v1362 = vpack.c.bf16 %v1343, %v1342
        %v1363 = vpack.c.bf16 %v1345, %v1344
        %v1364 = vpack.c.bf16 %v1347, %v1346
        %v1365 = vpack.c.bf16 %v1349, %v1348
        %v1367 = vsel %vm585, %v1110, 0
        %v1370 = vsel %vm585, %v1111, 0
        %v1373 = vsel %vm585, %v1112, 0
        %v1376 = vsel %vm585, %v1113, 0
        %v1379 = vsel %vm585, %v1114, 0
        %v1382 = vsel %vm585, %v1115, 0
        %v1385 = vsel %vm585, %v1116, 0
        %v1388 = vsel %vm585, %v1117, 0
        %v1391 = vsel %vm589, %v882, 0
        %1393 = vmatprep.subr.bf16.mxu0 0
        %1394 = vmatpush1.bf16.msra.mxu0 0
        %1395 = vmatprep.subr.bf16.mxu0 0
        %1396 = vmatpush1.bf16.msra.mxu0 0
        %1397 = vmatprep.subr.bf16.mxu0 0
        %1398 = vmatpush1.bf16.msra.mxu0 0
        %1399 = vmatprep.subr.bf16.mxu0 0
        %1400 = vmatpush1.bf16.msra.mxu0 0
        %1401 = vmatprep.subr.bf16.mxu0 0
        %1402 = vmatpush1.bf16.msra.mxu0 0
        %1403 = vmatprep.subr.bf16.mxu0 0
        %1404 = vmatpush1.bf16.msra.mxu0 0
        %1405 = vmatprep.subr.bf16.mxu0 0
        %1406 = vmatpush1.bf16.msra.mxu0 0
        %1407 = vmatprep.subr.bf16.mxu0 0
        %1408 = vmatpush1.bf16.msra.mxu0 %v1391
        %1409 = vmatprep.subr.bf16.mxu0 0
        %1410 = vmatpush2.bf16.msra.mxu0 0
        %1411 = vmatprep.subr.bf16.mxu0 0
        %1412 = vmatpush2.bf16.msra.mxu0 0
        %1413 = vmatprep.subr.bf16.mxu0 0
        %1414 = vmatpush2.bf16.msra.mxu0 0
        %1415 = vmatprep.subr.bf16.mxu0 0
        %1416 = vmatpush2.bf16.msra.mxu0 0
        %1417 = vmatprep.subr.bf16.mxu0 0
        %1418 = vmatpush2.bf16.msra.mxu0 0
        %1419 = vmatprep.subr.bf16.mxu0 0
        %1420 = vmatpush2.bf16.msra.mxu0 0
        %1421 = vmatprep.subr.bf16.mxu0 0
        %1422 = vmatpush2.bf16.msra.mxu0 0
        %1423 = vmatprep.subr.bf16.mxu0 0
        %1424 = vmatpush2.bf16.msra.mxu0 0
        %1425 = vmatprep.mubr.bf16.mxu0 0
        %1426 = vmatmul.mubr.bf16.gmra.mxu0 %v1367
        %v1427 = vpop.f32.mrf.mxu0
        %v1428 = vadd.f32 0.0, %v1427
        %v1429 = vpop.f32.mrf.mxu0
        %v1430 = vpop.f32.mrf.mxu0
        %v1431 = vadd.f32 0.0, %v1430
        %v1432 = vpop.f32.mrf.mxu0
        %1433 = vmatprep.mubr.bf16.mxu0 0
        %1434 = vmatmul.mubr.bf16.gmra.mxu0 %v1370
        %v1435 = vpop.f32.mrf.mxu0
        %v1436 = vadd.f32 0.0, %v1435
        %v1437 = vpop.f32.mrf.mxu0
        %v1438 = vpop.f32.mrf.mxu0
        %v1439 = vadd.f32 0.0, %v1438
        %v1440 = vpop.f32.mrf.mxu0
        %1441 = vmatprep.mubr.bf16.mxu0 0
        %1442 = vmatmul.mubr.bf16.gmra.mxu0 %v1373
        %v1443 = vpop.f32.mrf.mxu0
        %v1444 = vadd.f32 0.0, %v1443
        %v1445 = vpop.f32.mrf.mxu0
        %v1446 = vpop.f32.mrf.mxu0
        %v1447 = vadd.f32 0.0, %v1446
        %v1448 = vpop.f32.mrf.mxu0
        %1449 = vmatprep.mubr.bf16.mxu0 0
        %1450 = vmatmul.mubr.bf16.gmra.mxu0 %v1376
        %v1451 = vpop.f32.mrf.mxu0
        %v1452 = vadd.f32 0.0, %v1451
        %v1453 = vpop.f32.mrf.mxu0
        %v1454 = vpop.f32.mrf.mxu0
        %v1455 = vadd.f32 0.0, %v1454
        %v1456 = vpop.f32.mrf.mxu0
        %1457 = vmatprep.mubr.bf16.mxu0 0
        %1458 = vmatmul.mubr.bf16.gmra.mxu0 %v1379
        %v1459 = vpop.f32.mrf.mxu0
        %v1460 = vadd.f32 0.0, %v1459
        %v1461 = vpop.f32.mrf.mxu0
        %v1462 = vpop.f32.mrf.mxu0
        %v1463 = vadd.f32 0.0, %v1462
        %v1464 = vpop.f32.mrf.mxu0
        %1465 = vmatprep.mubr.bf16.mxu0 0
        %1466 = vmatmul.mubr.bf16.gmra.mxu0 %v1382
        %v1467 = vpop.f32.mrf.mxu0
        %v1468 = vadd.f32 0.0, %v1467
        %v1469 = vpop.f32.mrf.mxu0
        %v1470 = vpop.f32.mrf.mxu0
        %v1471 = vadd.f32 0.0, %v1470
        %v1472 = vpop.f32.mrf.mxu0
        %1473 = vmatprep.mubr.bf16.mxu0 0
        %1474 = vmatmul.mubr.bf16.gmra.mxu0 %v1385
        %v1475 = vpop.f32.mrf.mxu0
        %v1476 = vadd.f32 0.0, %v1475
        %v1477 = vpop.f32.mrf.mxu0
        %v1478 = vpop.f32.mrf.mxu0
        %v1479 = vadd.f32 0.0, %v1478
        %v1480 = vpop.f32.mrf.mxu0
        %1481 = vmatprep.mubr.bf16.mxu0 0
        %1482 = vmatmul.mubr.bf16.gmra.mxu0 %v1388
        %v1483 = vpop.f32.mrf.mxu0
        %v1484 = vadd.f32 0.0, %v1483
        %v1485 = vpop.f32.mrf.mxu0
        %v1486 = vpop.f32.mrf.mxu0
        %v1487 = vadd.f32 0.0, %v1486
        %v1488 = vpop.f32.mrf.mxu0
        %1489 = vdwg.mxu0
        %v1491 = vsel %vm585, %v1118, 0
        %v1494 = vsel %vm585, %v1119, 0
        %v1497 = vsel %vm585, %v1120, 0
        %v1500 = vsel %vm585, %v1121, 0
        %v1503 = vsel %vm585, %v1122, 0
        %v1506 = vsel %vm585, %v1123, 0
        %v1509 = vsel %vm585, %v1124, 0
        %v1512 = vsel %vm585, %v1125, 0
        %v1515 = vsel %vm589, %v883, 0
        %1517 = vmatprep.subr.bf16.mxu0 0
        %1518 = vmatpush1.bf16.msra.mxu0 0
        %1519 = vmatprep.subr.bf16.mxu0 0
        %1520 = vmatpush1.bf16.msra.mxu0 0
        %1521 = vmatprep.subr.bf16.mxu0 0
        %1522 = vmatpush1.bf16.msra.mxu0 0
        %1523 = vmatprep.subr.bf16.mxu0 0
        %1524 = vmatpush1.bf16.msra.mxu0 0
        %1525 = vmatprep.subr.bf16.mxu0 0
        %1526 = vmatpush1.bf16.msra.mxu0 0
        %1527 = vmatprep.subr.bf16.mxu0 0
        %1528 = vmatpush1.bf16.msra.mxu0 0
        %1529 = vmatprep.subr.bf16.mxu0 0
        %1530 = vmatpush1.bf16.msra.mxu0 0
        %1531 = vmatprep.subr.bf16.mxu0 0
        %1532 = vmatpush1.bf16.msra.mxu0 %v1515
        %1533 = vmatprep.subr.bf16.mxu0 0
        %1534 = vmatpush2.bf16.msra.mxu0 0
        %1535 = vmatprep.subr.bf16.mxu0 0
        %1536 = vmatpush2.bf16.msra.mxu0 0
        %1537 = vmatprep.subr.bf16.mxu0 0
        %1538 = vmatpush2.bf16.msra.mxu0 0
        %1539 = vmatprep.subr.bf16.mxu0 0
        %1540 = vmatpush2.bf16.msra.mxu0 0
        %1541 = vmatprep.subr.bf16.mxu0 0
        %1542 = vmatpush2.bf16.msra.mxu0 0
        %1543 = vmatprep.subr.bf16.mxu0 0
        %1544 = vmatpush2.bf16.msra.mxu0 0
        %1545 = vmatprep.subr.bf16.mxu0 0
        %1546 = vmatpush2.bf16.msra.mxu0 0
        %1547 = vmatprep.subr.bf16.mxu0 0
        %1548 = vmatpush2.bf16.msra.mxu0 0
        %1549 = vmatprep.mubr.bf16.mxu0 0
        %1550 = vmatmul.mubr.bf16.gmra.mxu0 %v1491
        %v1551 = vpop.f32.mrf.mxu0
        %v1552 = vadd.f32 0.0, %v1551
        %v1553 = vpop.f32.mrf.mxu0
        %v1554 = vpop.f32.mrf.mxu0
        %v1555 = vadd.f32 0.0, %v1554
        %v1556 = vpop.f32.mrf.mxu0
        %1557 = vmatprep.mubr.bf16.mxu0 0
        %1558 = vmatmul.mubr.bf16.gmra.mxu0 %v1494
        %v1559 = vpop.f32.mrf.mxu0
        %v1560 = vadd.f32 0.0, %v1559
        %v1561 = vpop.f32.mrf.mxu0
        %v1562 = vpop.f32.mrf.mxu0
        %v1563 = vadd.f32 0.0, %v1562
        %v1564 = vpop.f32.mrf.mxu0
        %1565 = vmatprep.mubr.bf16.mxu0 0
        %1566 = vmatmul.mubr.bf16.gmra.mxu0 %v1497
        %v1567 = vpop.f32.mrf.mxu0
        %v1568 = vadd.f32 0.0, %v1567
        %v1569 = vpop.f32.mrf.mxu0
        %v1570 = vpop.f32.mrf.mxu0
        %v1571 = vadd.f32 0.0, %v1570
        %v1572 = vpop.f32.mrf.mxu0
        %1573 = vmatprep.mubr.bf16.mxu0 0
        %1574 = vmatmul.mubr.bf16.gmra.mxu0 %v1500
        %v1575 = vpop.f32.mrf.mxu0
        %v1576 = vadd.f32 0.0, %v1575
        %v1577 = vpop.f32.mrf.mxu0
        %v1578 = vpop.f32.mrf.mxu0
        %v1579 = vadd.f32 0.0, %v1578
        %v1580 = vpop.f32.mrf.mxu0
        %1581 = vmatprep.mubr.bf16.mxu0 0
        %1582 = vmatmul.mubr.bf16.gmra.mxu0 %v1503
        %v1583 = vpop.f32.mrf.mxu0
        %v1584 = vadd.f32 0.0, %v1583
        %v1585 = vpop.f32.mrf.mxu0
        %v1586 = vpop.f32.mrf.mxu0
        %v1587 = vadd.f32 0.0, %v1586
        %v1588 = vpop.f32.mrf.mxu0
        %1589 = vmatprep.mubr.bf16.mxu0 0
        %1590 = vmatmul.mubr.bf16.gmra.mxu0 %v1506
        %v1591 = vpop.f32.mrf.mxu0
        %v1592 = vadd.f32 0.0, %v1591
        %v1593 = vpop.f32.mrf.mxu0
        %v1594 = vpop.f32.mrf.mxu0
        %v1595 = vadd.f32 0.0, %v1594
        %v1596 = vpop.f32.mrf.mxu0
        %1597 = vmatprep.mubr.bf16.mxu0 0
        %1598 = vmatmul.mubr.bf16.gmra.mxu0 %v1509
        %v1599 = vpop.f32.mrf.mxu0
        %v1600 = vadd.f32 0.0, %v1599
        %v1601 = vpop.f32.mrf.mxu0
        %v1602 = vpop.f32.mrf.mxu0
        %v1603 = vadd.f32 0.0, %v1602
        %v1604 = vpop.f32.mrf.mxu0
        %1605 = vmatprep.mubr.bf16.mxu0 0
        %1606 = vmatmul.mubr.bf16.gmra.mxu0 %v1512
        %v1607 = vpop.f32.mrf.mxu0
        %v1608 = vadd.f32 0.0, %v1607
        %v1609 = vpop.f32.mrf.mxu0
        %v1610 = vpop.f32.mrf.mxu0
        %v1611 = vadd.f32 0.0, %v1610
        %v1612 = vpop.f32.mrf.mxu0
        %1613 = vdwg.mxu0
        %v1615 = vsel %vm585, %v1350, 0
        %v1618 = vsel %vm585, %v1351, 0
        %v1621 = vsel %vm585, %v1352, 0
        %v1624 = vsel %vm585, %v1353, 0
        %v1627 = vsel %vm585, %v1354, 0
        %v1630 = vsel %vm585, %v1355, 0
        %v1633 = vsel %vm585, %v1356, 0
        %v1636 = vsel %vm585, %v1357, 0
        %1638 = vmatprep.subr.bf16.mxu0 0
        %1639 = vmatpush1.bf16.msra.mxu0 0
        %1640 = vmatprep.subr.bf16.mxu0 0
        %1641 = vmatpush1.bf16.msra.mxu0 0
        %1642 = vmatprep.subr.bf16.mxu0 0
        %1643 = vmatpush1.bf16.msra.mxu0 0
        %1644 = vmatprep.subr.bf16.mxu0 0
        %1645 = vmatpush1.bf16.msra.mxu0 0
        %1646 = vmatprep.subr.bf16.mxu0 0
        %1647 = vmatpush1.bf16.msra.mxu0 0
        %1648 = vmatprep.subr.bf16.mxu0 0
        %1649 = vmatpush1.bf16.msra.mxu0 0
        %1650 = vmatprep.subr.bf16.mxu0 0
        %1651 = vmatpush1.bf16.msra.mxu0 0
        %1652 = vmatprep.subr.bf16.mxu0 0
        %1653 = vmatpush1.bf16.msra.mxu0 %v1391
        %1654 = vmatprep.subr.bf16.mxu0 0
        %1655 = vmatpush2.bf16.msra.mxu0 0
        %1656 = vmatprep.subr.bf16.mxu0 0
        %1657 = vmatpush2.bf16.msra.mxu0 0
        %1658 = vmatprep.subr.bf16.mxu0 0
        %1659 = vmatpush2.bf16.msra.mxu0 0
        %1660 = vmatprep.subr.bf16.mxu0 0
        %1661 = vmatpush2.bf16.msra.mxu0 0
        %1662 = vmatprep.subr.bf16.mxu0 0
        %1663 = vmatpush2.bf16.msra.mxu0 0
        %1664 = vmatprep.subr.bf16.mxu0 0
        %1665 = vmatpush2.bf16.msra.mxu0 0
        %1666 = vmatprep.subr.bf16.mxu0 0
        %1667 = vmatpush2.bf16.msra.mxu0 0
        %1668 = vmatprep.subr.bf16.mxu0 0
        %1669 = vmatpush2.bf16.msra.mxu0 0
        %1670 = vmatprep.mubr.bf16.mxu0 0
        %1671 = vmatmul.mubr.bf16.gmra.mxu0 %v1615
        %v1672 = vpop.f32.mrf.mxu0
        %v1673 = vadd.f32 0.0, %v1672
        %v1674 = vpop.f32.mrf.mxu0
        %v1675 = vpop.f32.mrf.mxu0
        %v1676 = vadd.f32 0.0, %v1675
        %v1677 = vpop.f32.mrf.mxu0
        %1678 = vmatprep.mubr.bf16.mxu0 0
        %1679 = vmatmul.mubr.bf16.gmra.mxu0 %v1618
        %v1680 = vpop.f32.mrf.mxu0
        %v1681 = vadd.f32 0.0, %v1680
        %v1682 = vpop.f32.mrf.mxu0
        %v1683 = vpop.f32.mrf.mxu0
        %v1684 = vadd.f32 0.0, %v1683
        %v1685 = vpop.f32.mrf.mxu0
        %1686 = vmatprep.mubr.bf16.mxu0 0
        %1687 = vmatmul.mubr.bf16.gmra.mxu0 %v1621
        %v1688 = vpop.f32.mrf.mxu0
        %v1689 = vadd.f32 0.0, %v1688
        %v1690 = vpop.f32.mrf.mxu0
        %v1691 = vpop.f32.mrf.mxu0
        %v1692 = vadd.f32 0.0, %v1691
        %v1693 = vpop.f32.mrf.mxu0
        %1694 = vmatprep.mubr.bf16.mxu0 0
        %1695 = vmatmul.mubr.bf16.gmra.mxu0 %v1624
        %v1696 = vpop.f32.mrf.mxu0
        %v1697 = vadd.f32 0.0, %v1696
        %v1698 = vpop.f32.mrf.mxu0
        %v1699 = vpop.f32.mrf.mxu0
        %v1700 = vadd.f32 0.0, %v1699
        %v1701 = vpop.f32.mrf.mxu0
        %1702 = vmatprep.mubr.bf16.mxu0 0
        %1703 = vmatmul.mubr.bf16.gmra.mxu0 %v1627
        %v1704 = vpop.f32.mrf.mxu0
        %v1705 = vadd.f32 0.0, %v1704
        %v1706 = vpop.f32.mrf.mxu0
        %v1707 = vpop.f32.mrf.mxu0
        %v1708 = vadd.f32 0.0, %v1707
        %v1709 = vpop.f32.mrf.mxu0
        %1710 = vmatprep.mubr.bf16.mxu0 0
        %1711 = vmatmul.mubr.bf16.gmra.mxu0 %v1630
        %v1712 = vpop.f32.mrf.mxu0
        %v1713 = vadd.f32 0.0, %v1712
        %v1714 = vpop.f32.mrf.mxu0
        %v1715 = vpop.f32.mrf.mxu0
        %v1716 = vadd.f32 0.0, %v1715
        %v1717 = vpop.f32.mrf.mxu0
        %1718 = vmatprep.mubr.bf16.mxu0 0
        %1719 = vmatmul.mubr.bf16.gmra.mxu0 %v1633
        %v1720 = vpop.f32.mrf.mxu0
        %v1721 = vadd.f32 0.0, %v1720
        %v1722 = vpop.f32.mrf.mxu0
        %v1723 = vpop.f32.mrf.mxu0
        %v1724 = vadd.f32 0.0, %v1723
        %v1725 = vpop.f32.mrf.mxu0
        %1726 = vmatprep.mubr.bf16.mxu0 0
        %1727 = vmatmul.mubr.bf16.gmra.mxu0 %v1636
        %v1728 = vpop.f32.mrf.mxu0
        %v1729 = vadd.f32 0.0, %v1728
        %v1730 = vpop.f32.mrf.mxu0
        %v1731 = vpop.f32.mrf.mxu0
        %v1732 = vadd.f32 0.0, %v1731
        %v1733 = vpop.f32.mrf.mxu0
        %1734 = vdwg.mxu0
        %v1736 = vsel %vm585, %v1358, 0
        %v1739 = vsel %vm585, %v1359, 0
        %v1742 = vsel %vm585, %v1360, 0
        %v1745 = vsel %vm585, %v1361, 0
        %v1748 = vsel %vm585, %v1362, 0
        %v1751 = vsel %vm585, %v1363, 0
        %v1754 = vsel %vm585, %v1364, 0
        %v1757 = vsel %vm585, %v1365, 0
        %1759 = vmatprep.subr.bf16.mxu0 0
        %1760 = vmatpush1.bf16.msra.mxu0 0
        %1761 = vmatprep.subr.bf16.mxu0 0
        %1762 = vmatpush1.bf16.msra.mxu0 0
        %1763 = vmatprep.subr.bf16.mxu0 0
        %1764 = vmatpush1.bf16.msra.mxu0 0
        %1765 = vmatprep.subr.bf16.mxu0 0
        %1766 = vmatpush1.bf16.msra.mxu0 0
        %1767 = vmatprep.subr.bf16.mxu0 0
        %1768 = vmatpush1.bf16.msra.mxu0 0
        %1769 = vmatprep.subr.bf16.mxu0 0
        %1770 = vmatpush1.bf16.msra.mxu0 0
        %1771 = vmatprep.subr.bf16.mxu0 0
        %1772 = vmatpush1.bf16.msra.mxu0 0
        %1773 = vmatprep.subr.bf16.mxu0 0
        %1774 = vmatpush1.bf16.msra.mxu0 %v1515
        %1775 = vmatprep.subr.bf16.mxu0 0
        %1776 = vmatpush2.bf16.msra.mxu0 0
        %1777 = vmatprep.subr.bf16.mxu0 0
        %1778 = vmatpush2.bf16.msra.mxu0 0
        %1779 = vmatprep.subr.bf16.mxu0 0
        %1780 = vmatpush2.bf16.msra.mxu0 0
        %1781 = vmatprep.subr.bf16.mxu0 0
        %1782 = vmatpush2.bf16.msra.mxu0 0
        %1783 = vmatprep.subr.bf16.mxu0 0
        %1784 = vmatpush2.bf16.msra.mxu0 0
        %1785 = vmatprep.subr.bf16.mxu0 0
        %1786 = vmatpush2.bf16.msra.mxu0 0
        %1787 = vmatprep.subr.bf16.mxu0 0
        %1788 = vmatpush2.bf16.msra.mxu0 0
        %1789 = vmatprep.subr.bf16.mxu0 0
        %1790 = vmatpush2.bf16.msra.mxu0 0
        %1791 = vmatprep.mubr.bf16.mxu0 0
        %1792 = vmatmul.mubr.bf16.gmra.mxu0 %v1736
        %v1793 = vpop.f32.mrf.mxu0
        %v1794 = vadd.f32 0.0, %v1793
        %v1795 = vpop.f32.mrf.mxu0
        %v1796 = vpop.f32.mrf.mxu0
        %v1797 = vadd.f32 0.0, %v1796
        %v1798 = vpop.f32.mrf.mxu0
        %1799 = vmatprep.mubr.bf16.mxu0 0
        %1800 = vmatmul.mubr.bf16.gmra.mxu0 %v1739
        %v1801 = vpop.f32.mrf.mxu0
        %v1802 = vadd.f32 0.0, %v1801
        %v1803 = vpop.f32.mrf.mxu0
        %v1804 = vpop.f32.mrf.mxu0
        %v1805 = vadd.f32 0.0, %v1804
        %v1806 = vpop.f32.mrf.mxu0
        %1807 = vmatprep.mubr.bf16.mxu0 0
        %1808 = vmatmul.mubr.bf16.gmra.mxu0 %v1742
        %v1809 = vpop.f32.mrf.mxu0
        %v1810 = vadd.f32 0.0, %v1809
        %v1811 = vpop.f32.mrf.mxu0
        %v1812 = vpop.f32.mrf.mxu0
        %v1813 = vadd.f32 0.0, %v1812
        %v1814 = vpop.f32.mrf.mxu0
        %1815 = vmatprep.mubr.bf16.mxu0 0
        %1816 = vmatmul.mubr.bf16.gmra.mxu0 %v1745
        %v1817 = vpop.f32.mrf.mxu0
        %v1818 = vadd.f32 0.0, %v1817
        %v1819 = vpop.f32.mrf.mxu0
        %v1820 = vpop.f32.mrf.mxu0
        %v1821 = vadd.f32 0.0, %v1820
        %v1822 = vpop.f32.mrf.mxu0
        %1823 = vmatprep.mubr.bf16.mxu0 0
        %1824 = vmatmul.mubr.bf16.gmra.mxu0 %v1748
        %v1825 = vpop.f32.mrf.mxu0
        %v1826 = vadd.f32 0.0, %v1825
        %v1827 = vpop.f32.mrf.mxu0
        %v1828 = vpop.f32.mrf.mxu0
        %v1829 = vadd.f32 0.0, %v1828
        %v1830 = vpop.f32.mrf.mxu0
        %1831 = vmatprep.mubr.bf16.mxu0 0
        %1832 = vmatmul.mubr.bf16.gmra.mxu0 %v1751
        %v1833 = vpop.f32.mrf.mxu0
        %v1834 = vadd.f32 0.0, %v1833
        %v1835 = vpop.f32.mrf.mxu0
        %v1836 = vpop.f32.mrf.mxu0
        %v1837 = vadd.f32 0.0, %v1836
        %v1838 = vpop.f32.mrf.mxu0
        %1839 = vmatprep.mubr.bf16.mxu0 0
        %1840 = vmatmul.mubr.bf16.gmra.mxu0 %v1754
        %v1841 = vpop.f32.mrf.mxu0
        %v1842 = vadd.f32 0.0, %v1841
        %v1843 = vpop.f32.mrf.mxu0
        %v1844 = vpop.f32.mrf.mxu0
        %v1845 = vadd.f32 0.0, %v1844
        %v1846 = vpop.f32.mrf.mxu0
        %1847 = vmatprep.mubr.bf16.mxu0 0
        %1848 = vmatmul.mubr.bf16.gmra.mxu0 %v1757
        %v1849 = vpop.f32.mrf.mxu0
        %v1850 = vadd.f32 0.0, %v1849
        %v1851 = vpop.f32.mrf.mxu0
        %v1852 = vpop.f32.mrf.mxu0
        %v1853 = vadd.f32 0.0, %v1852
        %v1854 = vpop.f32.mrf.mxu0
        %1855 = vdwg.mxu0
        %v1856 = vpack.c.bf16 %v1431, %v1428
        %v1857 = vpack.c.bf16 %v1439, %v1436
        %v1858 = vpack.c.bf16 %v1447, %v1444
        %v1859 = vpack.c.bf16 %v1455, %v1452
        %v1860 = vpack.c.bf16 %v1463, %v1460
        %v1861 = vpack.c.bf16 %v1471, %v1468
        %v1862 = vpack.c.bf16 %v1479, %v1476
        %v1863 = vpack.c.bf16 %v1487, %v1484
        %v1864 = vpack.c.bf16 %v1555, %v1552
        %v1865 = vpack.c.bf16 %v1563, %v1560
        %v1866 = vpack.c.bf16 %v1571, %v1568
        %v1867 = vpack.c.bf16 %v1579, %v1576
        %v1868 = vpack.c.bf16 %v1587, %v1584
        %v1869 = vpack.c.bf16 %v1595, %v1592
        %v1870 = vpack.c.bf16 %v1603, %v1600
        %v1871 = vpack.c.bf16 %v1611, %v1608
        %v1872 = vld [vmem:[%s8] sm:$0xf]
        %v1873 = vld [vmem:[%s8 + $0x4] sm:$0xf]
        %v1874 = vld [vmem:[%s8 + $0x8] sm:$0xf]
        %v1875 = vld [vmem:[%s8 + $0xc] sm:$0xf]
        %v1876 = vld [vmem:[%s8 + $0x10] sm:$0xf]
        %v1877 = vld [vmem:[%s8 + $0x14] sm:$0xf]
        %v1878 = vld [vmem:[%s8 + $0x18] sm:$0xf]
        %v1879 = vld [vmem:[%s8 + $0x1c] sm:$0xf]
        %v1880 = vld [vmem:[%s8 + $0x20] sm:$0xf]
        %v1881 = vld [vmem:[%s8 + $0x24] sm:$0xf]
        %v1882 = vld [vmem:[%s8 + $0x28] sm:$0xf]
        %v1883 = vld [vmem:[%s8 + $0x2c] sm:$0xf]
        %v1884 = vld [vmem:[%s8 + $0x30] sm:$0xf]
        %v1885 = vld [vmem:[%s8 + $0x34] sm:$0xf]
        %v1886 = vld [vmem:[%s8 + $0x38] sm:$0xf]
        %v1887 = vld [vmem:[%s8 + $0x3c] sm:$0xf]
        %v1888 = vpack.c.bf16 %v1676, %v1673
        %v1889 = vpack.c.bf16 %v1684, %v1681
        %v1890 = vpack.c.bf16 %v1692, %v1689
        %v1891 = vpack.c.bf16 %v1700, %v1697
        %v1892 = vpack.c.bf16 %v1708, %v1705
        %v1893 = vpack.c.bf16 %v1716, %v1713
        %v1894 = vpack.c.bf16 %v1724, %v1721
        %v1895 = vpack.c.bf16 %v1732, %v1729
        %v1896 = vpack.c.bf16 %v1797, %v1794
        %v1897 = vpack.c.bf16 %v1805, %v1802
        %v1898 = vpack.c.bf16 %v1813, %v1810
        %v1899 = vpack.c.bf16 %v1821, %v1818
        %v1900 = vpack.c.bf16 %v1829, %v1826
        %v1901 = vpack.c.bf16 %v1837, %v1834
        %v1902 = vpack.c.bf16 %v1845, %v1842
        %v1903 = vpack.c.bf16 %v1853, %v1850
        %v1904 = vld [vmem:[%s9] sm:$0xf]
        %v1905 = vld [vmem:[%s9 + $0x4] sm:$0xf]
        %v1906 = vld [vmem:[%s9 + $0x8] sm:$0xf]
        %v1907 = vld [vmem:[%s9 + $0xc] sm:$0xf]
        %v1908 = vld [vmem:[%s9 + $0x10] sm:$0xf]
        %v1909 = vld [vmem:[%s9 + $0x14] sm:$0xf]
        %v1910 = vld [vmem:[%s9 + $0x18] sm:$0xf]
        %v1911 = vld [vmem:[%s9 + $0x1c] sm:$0xf]
        %v1912 = vld [vmem:[%s9 + $0x20] sm:$0xf]
        %v1913 = vld [vmem:[%s9 + $0x24] sm:$0xf]
        %v1914 = vld [vmem:[%s9 + $0x28] sm:$0xf]
        %v1915 = vld [vmem:[%s9 + $0x2c] sm:$0xf]
        %v1916 = vld [vmem:[%s9 + $0x30] sm:$0xf]
        %v1917 = vld [vmem:[%s9 + $0x34] sm:$0xf]
        %v1918 = vld [vmem:[%s9 + $0x38] sm:$0xf]
        %v1919 = vld [vmem:[%s9 + $0x3c] sm:$0xf]
        %v1936 = vunpack.c.l.b16 %v1904
        %v1937 = vunpack.c.l.b16 %v1905
        %v1938 = vunpack.c.l.b16 %v1906
        %v1939 = vunpack.c.l.b16 %v1907
        %v1940 = vunpack.c.l.b16 %v1908
        %v1941 = vunpack.c.l.b16 %v1909
        %v1942 = vunpack.c.l.b16 %v1910
        %v1943 = vunpack.c.l.b16 %v1911
        %v1944 = vunpack.c.l.b16 %v1912
        %v1945 = vunpack.c.l.b16 %v1913
        %v1946 = vunpack.c.l.b16 %v1914
        %v1947 = vunpack.c.l.b16 %v1915
        %v1948 = vunpack.c.l.b16 %v1916
        %v1949 = vunpack.c.l.b16 %v1917
        %v1950 = vunpack.c.l.b16 %v1918
        %v1951 = vunpack.c.l.b16 %v1919
        %v1952 = vpack.c.b16 %v1937, %v1936
        %v1953 = vpack.c.b16 %v1939, %v1938
        %v1954 = vpack.c.b16 %v1941, %v1940
        %v1955 = vpack.c.b16 %v1943, %v1942
        %v1956 = vpack.c.b16 %v1945, %v1944
        %v1957 = vpack.c.b16 %v1947, %v1946
        %v1958 = vpack.c.b16 %v1949, %v1948
        %v1959 = vpack.c.b16 %v1951, %v1950
        %1968 = vmatprep.subr.bf16.mxu0 0
        %1969 = vmatpush1.bf16.msra.mxu0 %v1959
        %1970 = vmatprep.subr.bf16.mxu0 0
        %1971 = vmatpush1.bf16.msra.mxu0 %v1958
        %1972 = vmatprep.subr.bf16.mxu0 0
        %1973 = vmatpush1.bf16.msra.mxu0 %v1957
        %1974 = vmatprep.subr.bf16.mxu0 0
        %1975 = vmatpush1.bf16.msra.mxu0 %v1956
        %1976 = vmatprep.subr.bf16.mxu0 0
        %1977 = vmatpush1.bf16.msra.mxu0 %v1955
        %1978 = vmatprep.subr.bf16.mxu0 0
        %1979 = vmatpush1.bf16.msra.mxu0 %v1954
        %1980 = vmatprep.subr.bf16.mxu0 0
        %1981 = vmatpush1.bf16.msra.mxu0 %v1953
        %1982 = vmatprep.subr.bf16.mxu0 0
        %1983 = vmatpush1.bf16.msra.mxu0 %v1952
        %1984 = vmatprep.subr.bf16.mxu0 0
        %1985 = vmatpush2.bf16.msra.mxu0 0
        %1986 = vmatprep.subr.bf16.mxu0 0
        %1987 = vmatpush2.bf16.msra.mxu0 0
        %1988 = vmatprep.subr.bf16.mxu0 0
        %1989 = vmatpush2.bf16.msra.mxu0 0
        %1990 = vmatprep.subr.bf16.mxu0 0
        %1991 = vmatpush2.bf16.msra.mxu0 0
        %1992 = vmatprep.subr.bf16.mxu0 0
        %1993 = vmatpush2.bf16.msra.mxu0 0
        %1994 = vmatprep.subr.bf16.mxu0 0
        %1995 = vmatpush2.bf16.msra.mxu0 0
        %1996 = vmatprep.subr.bf16.mxu0 0
        %1997 = vmatpush2.bf16.msra.mxu0 0
        %1998 = vmatprep.subr.bf16.mxu0 0
        %1999 = vmatpush2.bf16.msra.mxu0 0
        %2000 = vmatprep.mubr.bf16.mxu0 0
        %2001 = vmatmul.mubr.bf16.gmra.mxu0 %v1888
        %v2002 = vpop.f32.mrf.mxu0
        %v2003 = vadd.f32 0.0, %v2002
        %v2004 = vpop.f32.mrf.mxu0
        %v2005 = vpop.f32.mrf.mxu0
        %v2006 = vadd.f32 0.0, %v2005
        %v2007 = vpop.f32.mrf.mxu0
        %2008 = vmatprep.mubr.bf16.mxu0 0
        %2009 = vmatmul.mubr.bf16.gmra.mxu0 %v1889
        %v2010 = vpop.f32.mrf.mxu0
        %v2011 = vadd.f32 0.0, %v2010
        %v2012 = vpop.f32.mrf.mxu0
        %v2013 = vpop.f32.mrf.mxu0
        %v2014 = vadd.f32 0.0, %v2013
        %v2015 = vpop.f32.mrf.mxu0
        %2016 = vmatprep.mubr.bf16.mxu0 0
        %2017 = vmatmul.mubr.bf16.gmra.mxu0 %v1890
        %v2018 = vpop.f32.mrf.mxu0
        %v2019 = vadd.f32 0.0, %v2018
        %v2020 = vpop.f32.mrf.mxu0
        %v2021 = vpop.f32.mrf.mxu0
        %v2022 = vadd.f32 0.0, %v2021
        %v2023 = vpop.f32.mrf.mxu0
        %2024 = vmatprep.mubr.bf16.mxu0 0
        %2025 = vmatmul.mubr.bf16.gmra.mxu0 %v1891
        %v2026 = vpop.f32.mrf.mxu0
        %v2027 = vadd.f32 0.0, %v2026
        %v2028 = vpop.f32.mrf.mxu0
        %v2029 = vpop.f32.mrf.mxu0
        %v2030 = vadd.f32 0.0, %v2029
        %v2031 = vpop.f32.mrf.mxu0
        %2032 = vmatprep.mubr.bf16.mxu0 0
        %2033 = vmatmul.mubr.bf16.gmra.mxu0 %v1892
        %v2034 = vpop.f32.mrf.mxu0
        %v2035 = vadd.f32 0.0, %v2034
        %v2036 = vpop.f32.mrf.mxu0
        %v2037 = vpop.f32.mrf.mxu0
        %v2038 = vadd.f32 0.0, %v2037
        %v2039 = vpop.f32.mrf.mxu0
        %2040 = vmatprep.mubr.bf16.mxu0 0
        %2041 = vmatmul.mubr.bf16.gmra.mxu0 %v1893
        %v2042 = vpop.f32.mrf.mxu0
        %v2043 = vadd.f32 0.0, %v2042
        %v2044 = vpop.f32.mrf.mxu0
        %v2045 = vpop.f32.mrf.mxu0
        %v2046 = vadd.f32 0.0, %v2045
        %v2047 = vpop.f32.mrf.mxu0
        %2048 = vmatprep.mubr.bf16.mxu0 0
        %2049 = vmatmul.mubr.bf16.gmra.mxu0 %v1894
        %v2050 = vpop.f32.mrf.mxu0
        %v2051 = vadd.f32 0.0, %v2050
        %v2052 = vpop.f32.mrf.mxu0
        %v2053 = vpop.f32.mrf.mxu0
        %v2054 = vadd.f32 0.0, %v2053
        %v2055 = vpop.f32.mrf.mxu0
        %2056 = vmatprep.mubr.bf16.mxu0 0
        %2057 = vmatmul.mubr.bf16.gmra.mxu0 %v1895
        %v2058 = vpop.f32.mrf.mxu0
        %v2059 = vadd.f32 0.0, %v2058
        %v2060 = vpop.f32.mrf.mxu0
        %v2061 = vpop.f32.mrf.mxu0
        %v2062 = vadd.f32 0.0, %v2061
        %v2063 = vpop.f32.mrf.mxu0
        %2064 = vmatprep.mubr.bf16.mxu0 0
        %2065 = vmatmul.mubr.bf16.gmra.mxu0 %v1896
        %v2066 = vpop.f32.mrf.mxu0
        %v2067 = vadd.f32 0.0, %v2066
        %v2068 = vpop.f32.mrf.mxu0
        %v2069 = vpop.f32.mrf.mxu0
        %v2070 = vadd.f32 0.0, %v2069
        %v2071 = vpop.f32.mrf.mxu0
        %2072 = vmatprep.mubr.bf16.mxu0 0
        %2073 = vmatmul.mubr.bf16.gmra.mxu0 %v1897
        %v2074 = vpop.f32.mrf.mxu0
        %v2075 = vadd.f32 0.0, %v2074
        %v2076 = vpop.f32.mrf.mxu0
        %v2077 = vpop.f32.mrf.mxu0
        %v2078 = vadd.f32 0.0, %v2077
        %v2079 = vpop.f32.mrf.mxu0
        %2080 = vmatprep.mubr.bf16.mxu0 0
        %2081 = vmatmul.mubr.bf16.gmra.mxu0 %v1898
        %v2082 = vpop.f32.mrf.mxu0
        %v2083 = vadd.f32 0.0, %v2082
        %v2084 = vpop.f32.mrf.mxu0
        %v2085 = vpop.f32.mrf.mxu0
        %v2086 = vadd.f32 0.0, %v2085
        %v2087 = vpop.f32.mrf.mxu0
        %2088 = vmatprep.mubr.bf16.mxu0 0
        %2089 = vmatmul.mubr.bf16.gmra.mxu0 %v1899
        %v2090 = vpop.f32.mrf.mxu0
        %v2091 = vadd.f32 0.0, %v2090
        %v2092 = vpop.f32.mrf.mxu0
        %v2093 = vpop.f32.mrf.mxu0
        %v2094 = vadd.f32 0.0, %v2093
        %v2095 = vpop.f32.mrf.mxu0
        %2096 = vmatprep.mubr.bf16.mxu0 0
        %2097 = vmatmul.mubr.bf16.gmra.mxu0 %v1900
        %v2098 = vpop.f32.mrf.mxu0
        %v2099 = vadd.f32 0.0, %v2098
        %v2100 = vpop.f32.mrf.mxu0
        %v2101 = vpop.f32.mrf.mxu0
        %v2102 = vadd.f32 0.0, %v2101
        %v2103 = vpop.f32.mrf.mxu0
        %2104 = vmatprep.mubr.bf16.mxu0 0
        %2105 = vmatmul.mubr.bf16.gmra.mxu0 %v1901
        %v2106 = vpop.f32.mrf.mxu0
        %v2107 = vadd.f32 0.0, %v2106
        %v2108 = vpop.f32.mrf.mxu0
        %v2109 = vpop.f32.mrf.mxu0
        %v2110 = vadd.f32 0.0, %v2109
        %v2111 = vpop.f32.mrf.mxu0
        %2112 = vmatprep.mubr.bf16.mxu0 0
        %2113 = vmatmul.mubr.bf16.gmra.mxu0 %v1902
        %v2114 = vpop.f32.mrf.mxu0
        %v2115 = vadd.f32 0.0, %v2114
        %v2116 = vpop.f32.mrf.mxu0
        %v2117 = vpop.f32.mrf.mxu0
        %v2118 = vadd.f32 0.0, %v2117
        %v2119 = vpop.f32.mrf.mxu0
        %2120 = vmatprep.mubr.bf16.mxu0 0
        %2121 = vmatmul.mubr.bf16.gmra.mxu0 %v1903
        %v2122 = vpop.f32.mrf.mxu0
        %v2123 = vadd.f32 0.0, %v2122
        %v2124 = vpop.f32.mrf.mxu0
        %v2125 = vpop.f32.mrf.mxu0
        %v2126 = vadd.f32 0.0, %v2125
        %v2127 = vpop.f32.mrf.mxu0
        %2128 = vdwg.mxu0
        %v2145 = vunpack.c.l.b16 %v1872
        %v2146 = vunpack.c.l.b16 %v1873
        %v2147 = vunpack.c.l.b16 %v1874
        %v2148 = vunpack.c.l.b16 %v1875
        %v2149 = vunpack.c.l.b16 %v1876
        %v2150 = vunpack.c.l.b16 %v1877
        %v2151 = vunpack.c.l.b16 %v1878
        %v2152 = vunpack.c.l.b16 %v1879
        %v2153 = vunpack.c.l.b16 %v1880
        %v2154 = vunpack.c.l.b16 %v1881
        %v2155 = vunpack.c.l.b16 %v1882
        %v2156 = vunpack.c.l.b16 %v1883
        %v2157 = vunpack.c.l.b16 %v1884
        %v2158 = vunpack.c.l.b16 %v1885
        %v2159 = vunpack.c.l.b16 %v1886
        %v2160 = vunpack.c.l.b16 %v1887
        %v2161 = vpack.c.b16 %v2146, %v2145
        %v2162 = vpack.c.b16 %v2148, %v2147
        %v2163 = vpack.c.b16 %v2150, %v2149
        %v2164 = vpack.c.b16 %v2152, %v2151
        %v2165 = vpack.c.b16 %v2154, %v2153
        %v2166 = vpack.c.b16 %v2156, %v2155
        %v2167 = vpack.c.b16 %v2158, %v2157
        %v2168 = vpack.c.b16 %v2160, %v2159
        %2177 = vmatprep.subr.bf16.mxu0 0
        %2178 = vmatpush1.bf16.msra.mxu0 %v2168
        %2179 = vmatprep.subr.bf16.mxu0 0
        %2180 = vmatpush1.bf16.msra.mxu0 %v2167
        %2181 = vmatprep.subr.bf16.mxu0 0
        %2182 = vmatpush1.bf16.msra.mxu0 %v2166
        %2183 = vmatprep.subr.bf16.mxu0 0
        %2184 = vmatpush1.bf16.msra.mxu0 %v2165
        %2185 = vmatprep.subr.bf16.mxu0 0
        %2186 = vmatpush1.bf16.msra.mxu0 %v2164
        %2187 = vmatprep.subr.bf16.mxu0 0
        %2188 = vmatpush1.bf16.msra.mxu0 %v2163
        %2189 = vmatprep.subr.bf16.mxu0 0
        %2190 = vmatpush1.bf16.msra.mxu0 %v2162
        %2191 = vmatprep.subr.bf16.mxu0 0
        %2192 = vmatpush1.bf16.msra.mxu0 %v2161
        %2193 = vmatprep.subr.bf16.mxu0 0
        %2194 = vmatpush2.bf16.msra.mxu0 0
        %2195 = vmatprep.subr.bf16.mxu0 0
        %2196 = vmatpush2.bf16.msra.mxu0 0
        %2197 = vmatprep.subr.bf16.mxu0 0
        %2198 = vmatpush2.bf16.msra.mxu0 0
        %2199 = vmatprep.subr.bf16.mxu0 0
        %2200 = vmatpush2.bf16.msra.mxu0 0
        %2201 = vmatprep.subr.bf16.mxu0 0
        %2202 = vmatpush2.bf16.msra.mxu0 0
        %2203 = vmatprep.subr.bf16.mxu0 0
        %2204 = vmatpush2.bf16.msra.mxu0 0
        %2205 = vmatprep.subr.bf16.mxu0 0
        %2206 = vmatpush2.bf16.msra.mxu0 0
        %2207 = vmatprep.subr.bf16.mxu0 0
        %2208 = vmatpush2.bf16.msra.mxu0 0
        %2209 = vmatprep.mubr.bf16.mxu0 0
        %2210 = vmatmul.mubr.bf16.gmra.mxu0 %v1856
        %v2211 = vpop.f32.mrf.mxu0
        %v2212 = vadd.f32 %v2003, %v2211
        %v2213 = vpop.f32.mrf.mxu0
        %v2214 = vpop.f32.mrf.mxu0
        %v2215 = vadd.f32 %v2006, %v2214
        %v2216 = vpop.f32.mrf.mxu0
        %2217 = vmatprep.mubr.bf16.mxu0 0
        %2218 = vmatmul.mubr.bf16.gmra.mxu0 %v1857
        %v2219 = vpop.f32.mrf.mxu0
        %v2220 = vadd.f32 %v2011, %v2219
        %v2221 = vpop.f32.mrf.mxu0
        %v2222 = vpop.f32.mrf.mxu0
        %v2223 = vadd.f32 %v2014, %v2222
        %v2224 = vpop.f32.mrf.mxu0
        %2225 = vmatprep.mubr.bf16.mxu0 0
        %2226 = vmatmul.mubr.bf16.gmra.mxu0 %v1858
        %v2227 = vpop.f32.mrf.mxu0
        %v2228 = vadd.f32 %v2019, %v2227
        %v2229 = vpop.f32.mrf.mxu0
        %v2230 = vpop.f32.mrf.mxu0
        %v2231 = vadd.f32 %v2022, %v2230
        %v2232 = vpop.f32.mrf.mxu0
        %2233 = vmatprep.mubr.bf16.mxu0 0
        %2234 = vmatmul.mubr.bf16.gmra.mxu0 %v1859
        %v2235 = vpop.f32.mrf.mxu0
        %v2236 = vadd.f32 %v2027, %v2235
        %v2237 = vpop.f32.mrf.mxu0
        %v2238 = vpop.f32.mrf.mxu0
        %v2239 = vadd.f32 %v2030, %v2238
        %v2240 = vpop.f32.mrf.mxu0
        %2241 = vmatprep.mubr.bf16.mxu0 0
        %2242 = vmatmul.mubr.bf16.gmra.mxu0 %v1860
        %v2243 = vpop.f32.mrf.mxu0
        %v2244 = vadd.f32 %v2035, %v2243
        %v2245 = vpop.f32.mrf.mxu0
        %v2246 = vpop.f32.mrf.mxu0
        %v2247 = vadd.f32 %v2038, %v2246
        %v2248 = vpop.f32.mrf.mxu0
        %2249 = vmatprep.mubr.bf16.mxu0 0
        %2250 = vmatmul.mubr.bf16.gmra.mxu0 %v1861
        %v2251 = vpop.f32.mrf.mxu0
        %v2252 = vadd.f32 %v2043, %v2251
        %v2253 = vpop.f32.mrf.mxu0
        %v2254 = vpop.f32.mrf.mxu0
        %v2255 = vadd.f32 %v2046, %v2254
        %v2256 = vpop.f32.mrf.mxu0
        %2257 = vmatprep.mubr.bf16.mxu0 0
        %2258 = vmatmul.mubr.bf16.gmra.mxu0 %v1862
        %v2259 = vpop.f32.mrf.mxu0
        %v2260 = vadd.f32 %v2051, %v2259
        %v2261 = vpop.f32.mrf.mxu0
        %v2262 = vpop.f32.mrf.mxu0
        %v2263 = vadd.f32 %v2054, %v2262
        %v2264 = vpop.f32.mrf.mxu0
        %2265 = vmatprep.mubr.bf16.mxu0 0
        %2266 = vmatmul.mubr.bf16.gmra.mxu0 %v1863
        %v2267 = vpop.f32.mrf.mxu0
        %v2268 = vadd.f32 %v2059, %v2267
        %v2269 = vpop.f32.mrf.mxu0
        %v2270 = vpop.f32.mrf.mxu0
        %v2271 = vadd.f32 %v2062, %v2270
        %v2272 = vpop.f32.mrf.mxu0
        %2273 = vmatprep.mubr.bf16.mxu0 0
        %2274 = vmatmul.mubr.bf16.gmra.mxu0 %v1864
        %v2275 = vpop.f32.mrf.mxu0
        %v2276 = vadd.f32 %v2067, %v2275
        %v2277 = vpop.f32.mrf.mxu0
        %v2278 = vpop.f32.mrf.mxu0
        %v2279 = vadd.f32 %v2070, %v2278
        %v2280 = vpop.f32.mrf.mxu0
        %2281 = vmatprep.mubr.bf16.mxu0 0
        %2282 = vmatmul.mubr.bf16.gmra.mxu0 %v1865
        %v2283 = vpop.f32.mrf.mxu0
        %v2284 = vadd.f32 %v2075, %v2283
        %v2285 = vpop.f32.mrf.mxu0
        %v2286 = vpop.f32.mrf.mxu0
        %v2287 = vadd.f32 %v2078, %v2286
        %v2288 = vpop.f32.mrf.mxu0
        %2289 = vmatprep.mubr.bf16.mxu0 0
        %2290 = vmatmul.mubr.bf16.gmra.mxu0 %v1866
        %v2291 = vpop.f32.mrf.mxu0
        %v2292 = vadd.f32 %v2083, %v2291
        %v2293 = vpop.f32.mrf.mxu0
        %v2294 = vpop.f32.mrf.mxu0
        %v2295 = vadd.f32 %v2086, %v2294
        %v2296 = vpop.f32.mrf.mxu0
        %2297 = vmatprep.mubr.bf16.mxu0 0
        %2298 = vmatmul.mubr.bf16.gmra.mxu0 %v1867
        %v2299 = vpop.f32.mrf.mxu0
        %v2300 = vadd.f32 %v2091, %v2299
        %v2301 = vpop.f32.mrf.mxu0
        %v2302 = vpop.f32.mrf.mxu0
        %v2303 = vadd.f32 %v2094, %v2302
        %v2304 = vpop.f32.mrf.mxu0
        %2305 = vmatprep.mubr.bf16.mxu0 0
        %2306 = vmatmul.mubr.bf16.gmra.mxu0 %v1868
        %v2307 = vpop.f32.mrf.mxu0
        %v2308 = vadd.f32 %v2099, %v2307
        %v2309 = vpop.f32.mrf.mxu0
        %v2310 = vpop.f32.mrf.mxu0
        %v2311 = vadd.f32 %v2102, %v2310
        %v2312 = vpop.f32.mrf.mxu0
        %2313 = vmatprep.mubr.bf16.mxu0 0
        %2314 = vmatmul.mubr.bf16.gmra.mxu0 %v1869
        %v2315 = vpop.f32.mrf.mxu0
        %v2316 = vadd.f32 %v2107, %v2315
        %v2317 = vpop.f32.mrf.mxu0
        %v2318 = vpop.f32.mrf.mxu0
        %v2319 = vadd.f32 %v2110, %v2318
        %v2320 = vpop.f32.mrf.mxu0
        %2321 = vmatprep.mubr.bf16.mxu0 0
        %2322 = vmatmul.mubr.bf16.gmra.mxu0 %v1870
        %v2323 = vpop.f32.mrf.mxu0
        %v2324 = vadd.f32 %v2115, %v2323
        %v2325 = vpop.f32.mrf.mxu0
        %v2326 = vpop.f32.mrf.mxu0
        %v2327 = vadd.f32 %v2118, %v2326
        %v2328 = vpop.f32.mrf.mxu0
        %2329 = vmatprep.mubr.bf16.mxu0 0
        %2330 = vmatmul.mubr.bf16.gmra.mxu0 %v1871
        %v2331 = vpop.f32.mrf.mxu0
        %v2332 = vadd.f32 %v2123, %v2331
        %v2333 = vpop.f32.mrf.mxu0
        %v2334 = vpop.f32.mrf.mxu0
        %v2335 = vadd.f32 %v2126, %v2334
        %v2336 = vpop.f32.mrf.mxu0
        %2337 = vdwg.mxu0
        %v2338 = vld [vmem:[%s10] sm:$0x1]
        %v2340 = vlaneseq
        %v2341 = vshrl.u32 %v2340, 7
        %v2342 = vsub.s32 0, %v2341
        %v2343 = vrot.slane %v2338, %v2342
        %v2345 = vadd.f32 %v2212, %v2343
        %v2346 = vadd.f32 %v2215, %v2343
        %v2347 = vadd.f32 %v2220, %v2343
        %v2348 = vadd.f32 %v2223, %v2343
        %v2349 = vadd.f32 %v2228, %v2343
        %v2350 = vadd.f32 %v2231, %v2343
        %v2351 = vadd.f32 %v2236, %v2343
        %v2352 = vadd.f32 %v2239, %v2343
        %v2353 = vadd.f32 %v2244, %v2343
        %v2354 = vadd.f32 %v2247, %v2343
        %v2355 = vadd.f32 %v2252, %v2343
        %v2356 = vadd.f32 %v2255, %v2343
        %v2357 = vadd.f32 %v2260, %v2343
        %v2358 = vadd.f32 %v2263, %v2343
        %v2359 = vadd.f32 %v2268, %v2343
        %v2360 = vadd.f32 %v2271, %v2343
        %v2361 = vadd.f32 %v2276, %v2343
        %v2362 = vadd.f32 %v2279, %v2343
        %v2363 = vadd.f32 %v2284, %v2343
        %v2364 = vadd.f32 %v2287, %v2343
        %v2365 = vadd.f32 %v2292, %v2343
        %v2366 = vadd.f32 %v2295, %v2343
        %v2367 = vadd.f32 %v2300, %v2343
        %v2368 = vadd.f32 %v2303, %v2343
        %v2369 = vadd.f32 %v2308, %v2343
        %v2370 = vadd.f32 %v2311, %v2343
        %v2371 = vadd.f32 %v2316, %v2343
        %v2372 = vadd.f32 %v2319, %v2343
        %v2373 = vadd.f32 %v2324, %v2343
        %v2374 = vadd.f32 %v2327, %v2343
        %v2375 = vadd.f32 %v2332, %v2343
        %v2376 = vadd.f32 %v2335, %v2343
        %v2377 = vmax.f32 %v2345, 0.0
        %v2378 = vmax.f32 %v2346, 0.0
        %v2379 = vmax.f32 %v2347, 0.0
        %v2380 = vmax.f32 %v2348, 0.0
        %v2381 = vmax.f32 %v2349, 0.0
        %v2382 = vmax.f32 %v2350, 0.0
        %v2383 = vmax.f32 %v2351, 0.0
        %v2384 = vmax.f32 %v2352, 0.0
        %v2385 = vmax.f32 %v2353, 0.0
        %v2386 = vmax.f32 %v2354, 0.0
        %v2387 = vmax.f32 %v2355, 0.0
        %v2388 = vmax.f32 %v2356, 0.0
        %v2389 = vmax.f32 %v2357, 0.0
        %v2390 = vmax.f32 %v2358, 0.0
        %v2391 = vmax.f32 %v2359, 0.0
        %v2392 = vmax.f32 %v2360, 0.0
        %v2393 = vmax.f32 %v2361, 0.0
        %v2394 = vmax.f32 %v2362, 0.0
        %v2395 = vmax.f32 %v2363, 0.0
        %v2396 = vmax.f32 %v2364, 0.0
        %v2397 = vmax.f32 %v2365, 0.0
        %v2398 = vmax.f32 %v2366, 0.0
        %v2399 = vmax.f32 %v2367, 0.0
        %v2400 = vmax.f32 %v2368, 0.0
        %v2401 = vmax.f32 %v2369, 0.0
        %v2402 = vmax.f32 %v2370, 0.0
        %v2403 = vmax.f32 %v2371, 0.0
        %v2404 = vmax.f32 %v2372, 0.0
        %v2405 = vmax.f32 %v2373, 0.0
        %v2406 = vmax.f32 %v2374, 0.0
        %v2407 = vmax.f32 %v2375, 0.0
        %v2408 = vmax.f32 %v2376, 0.0
        %v2409 = vld [vmem:[%s11] sm:$0x1]
        %v2411 = vlaneseq
        %v2412 = vshrl.u32 %v2411, 7
        %v2413 = vsub.s32 0, %v2412
        %v2414 = vrot.slane %v2409, %v2413
        %v2416 = vmul.f32 %v2377, %v2414
        %v2417 = vmul.f32 %v2378, %v2414
        %v2418 = vmul.f32 %v2379, %v2414
        %v2419 = vmul.f32 %v2380, %v2414
        %v2420 = vmul.f32 %v2381, %v2414
        %v2421 = vmul.f32 %v2382, %v2414
        %v2422 = vmul.f32 %v2383, %v2414
        %v2423 = vmul.f32 %v2384, %v2414
        %v2424 = vmul.f32 %v2385, %v2414
        %v2425 = vmul.f32 %v2386, %v2414
        %v2426 = vmul.f32 %v2387, %v2414
        %v2427 = vmul.f32 %v2388, %v2414
        %v2428 = vmul.f32 %v2389, %v2414
        %v2429 = vmul.f32 %v2390, %v2414
        %v2430 = vmul.f32 %v2391, %v2414
        %v2431 = vmul.f32 %v2392, %v2414
        %v2432 = vmul.f32 %v2393, %v2414
        %v2433 = vmul.f32 %v2394, %v2414
        %v2434 = vmul.f32 %v2395, %v2414
        %v2435 = vmul.f32 %v2396, %v2414
        %v2436 = vmul.f32 %v2397, %v2414
        %v2437 = vmul.f32 %v2398, %v2414
        %v2438 = vmul.f32 %v2399, %v2414
        %v2439 = vmul.f32 %v2400, %v2414
        %v2440 = vmul.f32 %v2401, %v2414
        %v2441 = vmul.f32 %v2402, %v2414
        %v2442 = vmul.f32 %v2403, %v2414
        %v2443 = vmul.f32 %v2404, %v2414
        %v2444 = vmul.f32 %v2405, %v2414
        %v2445 = vmul.f32 %v2406, %v2414
        %v2446 = vmul.f32 %v2407, %v2414
        %v2447 = vmul.f32 %v2408, %v2414
        %2448 = vadd.xlane.f32.xlu0 %v2416
        %v2449 = vpop.xlane.xlu0 %2448
        %2450 = vadd.xlane.f32.xlu0 %v2417
        %v2451 = vpop.xlane.xlu0 %2450
        %2452 = vadd.xlane.f32.xlu0 %v2418
        %v2453 = vpop.xlane.xlu0 %2452
        %2454 = vadd.xlane.f32.xlu0 %v2419
        %v2455 = vpop.xlane.xlu0 %2454
        %2456 = vadd.xlane.f32.xlu0 %v2420
        %v2457 = vpop.xlane.xlu0 %2456
        %2458 = vadd.xlane.f32.xlu0 %v2421
        %v2459 = vpop.xlane.xlu0 %2458
        %2460 = vadd.xlane.f32.xlu0 %v2422
        %v2461 = vpop.xlane.xlu0 %2460
        %2462 = vadd.xlane.f32.xlu0 %v2423
        %v2463 = vpop.xlane.xlu0 %2462
        %2464 = vadd.xlane.f32.xlu0 %v2424
        %v2465 = vpop.xlane.xlu0 %2464
        %2466 = vadd.xlane.f32.xlu0 %v2425
        %v2467 = vpop.xlane.xlu0 %2466
        %2468 = vadd.xlane.f32.xlu0 %v2426
        %v2469 = vpop.xlane.xlu0 %2468
        %2470 = vadd.xlane.f32.xlu0 %v2427
        %v2471 = vpop.xlane.xlu0 %2470
        %2472 = vadd.xlane.f32.xlu0 %v2428
        %v2473 = vpop.xlane.xlu0 %2472
        %2474 = vadd.xlane.f32.xlu0 %v2429
        %v2475 = vpop.xlane.xlu0 %2474
        %2476 = vadd.xlane.f32.xlu0 %v2430
        %v2477 = vpop.xlane.xlu0 %2476
        %2478 = vadd.xlane.f32.xlu0 %v2431
        %v2479 = vpop.xlane.xlu0 %2478
        %2480 = vadd.xlane.f32.xlu0 %v2432
        %v2481 = vpop.xlane.xlu0 %2480
        %2482 = vadd.xlane.f32.xlu0 %v2433
        %v2483 = vpop.xlane.xlu0 %2482
        %2484 = vadd.xlane.f32.xlu0 %v2434
        %v2485 = vpop.xlane.xlu0 %2484
        %2486 = vadd.xlane.f32.xlu0 %v2435
        %v2487 = vpop.xlane.xlu0 %2486
        %2488 = vadd.xlane.f32.xlu0 %v2436
        %v2489 = vpop.xlane.xlu0 %2488
        %2490 = vadd.xlane.f32.xlu0 %v2437
        %v2491 = vpop.xlane.xlu0 %2490
        %2492 = vadd.xlane.f32.xlu0 %v2438
        %v2493 = vpop.xlane.xlu0 %2492
        %2494 = vadd.xlane.f32.xlu0 %v2439
        %v2495 = vpop.xlane.xlu0 %2494
        %2496 = vadd.xlane.f32.xlu0 %v2440
        %v2497 = vpop.xlane.xlu0 %2496
        %2498 = vadd.xlane.f32.xlu0 %v2441
        %v2499 = vpop.xlane.xlu0 %2498
        %2500 = vadd.xlane.f32.xlu0 %v2442
        %v2501 = vpop.xlane.xlu0 %2500
        %2502 = vadd.xlane.f32.xlu0 %v2443
        %v2503 = vpop.xlane.xlu0 %2502
        %2504 = vadd.xlane.f32.xlu0 %v2444
        %v2505 = vpop.xlane.xlu0 %2504
        %2506 = vadd.xlane.f32.xlu0 %v2445
        %v2507 = vpop.xlane.xlu0 %2506
        %2508 = vadd.xlane.f32.xlu0 %v2446
        %v2509 = vpop.xlane.xlu0 %2508
        %2510 = vadd.xlane.f32.xlu0 %v2447
        %v2511 = vpop.xlane.xlu0 %2510
        %v2512 = vld [vmem:[#allocation2] sm:$0x1]
        %v2514 = vlaneseq
        %v2515 = vshrl.u32 %v2514, 7
        %v2516 = vsub.s32 0, %v2515
        %v2517 = vrot.slane %v2512, %v2516
        %2518 = vset.pattern.permute.xlu0 0
        %2519 = vperm.xlu0 %2518, %v2517
        %v2520 = vpop.permute.xlu0 %2519
        %v2522 = vadd.f32 %v2449, %v2520
        %v2523 = vadd.f32 %v2451, %v2520
        %v2524 = vadd.f32 %v2453, %v2520
        %v2525 = vadd.f32 %v2455, %v2520
        %v2526 = vadd.f32 %v2457, %v2520
        %v2527 = vadd.f32 %v2459, %v2520
        %v2528 = vadd.f32 %v2461, %v2520
        %v2529 = vadd.f32 %v2463, %v2520
        %v2530 = vadd.f32 %v2465, %v2520
        %v2531 = vadd.f32 %v2467, %v2520
        %v2532 = vadd.f32 %v2469, %v2520
        %v2533 = vadd.f32 %v2471, %v2520
        %v2534 = vadd.f32 %v2473, %v2520
        %v2535 = vadd.f32 %v2475, %v2520
        %v2536 = vadd.f32 %v2477, %v2520
        %v2537 = vadd.f32 %v2479, %v2520
        %v2538 = vadd.f32 %v2481, %v2520
        %v2539 = vadd.f32 %v2483, %v2520
        %v2540 = vadd.f32 %v2485, %v2520
        %v2541 = vadd.f32 %v2487, %v2520
        %v2542 = vadd.f32 %v2489, %v2520
        %v2543 = vadd.f32 %v2491, %v2520
        %v2544 = vadd.f32 %v2493, %v2520
        %v2545 = vadd.f32 %v2495, %v2520
        %v2546 = vadd.f32 %v2497, %v2520
        %v2547 = vadd.f32 %v2499, %v2520
        %v2548 = vadd.f32 %v2501, %v2520
        %v2549 = vadd.f32 %v2503, %v2520
        %v2550 = vadd.f32 %v2505, %v2520
        %v2551 = vadd.f32 %v2507, %v2520
        %v2552 = vadd.f32 %v2509, %v2520
        %v2553 = vadd.f32 %v2511, %v2520
        %v2586 = vlaneseq
        %v2587 = vshrl.u32 %v2586, 7
        %v2588 = vsub.s32 %v885, %v2587
        %v2589 = vrot.slane %v2522, %v2588
        %v2590 = vadd.s32 %v885, 4294967288
        %v2591 = vlaneseq
        %v2592 = vshrl.u32 %v2591, 7
        %v2593 = vsub.s32 %v2590, %v2592
        %v2594 = vrot.slane %v2523, %v2593
        %vm2595 = vcmask 130112
        %v2596 = vsel %vm2595, %v2594, %v2589
        %v2597 = vadd.s32 %v885, 4294967280
        %v2598 = vlaneseq
        %v2599 = vshrl.u32 %v2598, 7
        %v2600 = vsub.s32 %v2597, %v2599
        %v2601 = vrot.slane %v2524, %v2600
        %vm2602 = vcmask 195712
        %v2603 = vsel %vm2602, %v2601, %v2596
        %v2604 = vadd.s32 %v885, 4294967272
        %v2605 = vlaneseq
        %v2606 = vshrl.u32 %v2605, 7
        %v2607 = vsub.s32 %v2604, %v2606
        %v2608 = vrot.slane %v2525, %v2607
        %vm2609 = vcmask 261312
        %v2610 = vsel %vm2609, %v2608, %v2603
        %v2611 = vadd.s32 %v885, 4294967264
        %v2612 = vlaneseq
        %v2613 = vshrl.u32 %v2612, 7
        %v2614 = vsub.s32 %v2611, %v2613
        %v2615 = vrot.slane %v2526, %v2614
        %vm2616 = vcmask 326912
        %v2617 = vsel %vm2616, %v2615, %v2610
        %v2618 = vadd.s32 %v885, 4294967256
        %v2619 = vlaneseq
        %v2620 = vshrl.u32 %v2619, 7
        %v2621 = vsub.s32 %v2618, %v2620
        %v2622 = vrot.slane %v2527, %v2621
        %vm2623 = vcmask 392512
        %v2624 = vsel %vm2623, %v2622, %v2617
        %v2625 = vadd.s32 %v885, 4294967248
        %v2626 = vlaneseq
        %v2627 = vshrl.u32 %v2626, 7
        %v2628 = vsub.s32 %v2625, %v2627
        %v2629 = vrot.slane %v2528, %v2628
        %vm2630 = vcmask 458112
        %v2631 = vsel %vm2630, %v2629, %v2624
        %v2632 = vadd.s32 %v885, 4294967240
        %v2633 = vlaneseq
        %v2634 = vshrl.u32 %v2633, 7
        %v2635 = vsub.s32 %v2632, %v2634
        %v2636 = vrot.slane %v2529, %v2635
        %vm2637 = vcmask 523712
        %v2638 = vsel %vm2637, %v2636, %v2631
        %v2639 = vadd.s32 %v885, 4294967232
        %v2640 = vlaneseq
        %v2641 = vshrl.u32 %v2640, 7
        %v2642 = vsub.s32 %v2639, %v2641
        %v2643 = vrot.slane %v2530, %v2642
        %vm2644 = vcmask 589312
        %v2645 = vsel %vm2644, %v2643, %v2638
        %v2646 = vadd.s32 %v885, 4294967224
        %v2647 = vlaneseq
        %v2648 = vshrl.u32 %v2647, 7
        %v2649 = vsub.s32 %v2646, %v2648
        %v2650 = vrot.slane %v2531, %v2649
        %vm2651 = vcmask 654912
        %v2652 = vsel %vm2651, %v2650, %v2645
        %v2653 = vadd.s32 %v885, 4294967216
        %v2654 = vlaneseq
        %v2655 = vshrl.u32 %v2654, 7
        %v2656 = vsub.s32 %v2653, %v2655
        %v2657 = vrot.slane %v2532, %v2656
        %vm2658 = vcmask 720512
        %v2659 = vsel %vm2658, %v2657, %v2652
        %v2660 = vadd.s32 %v885, 4294967208
        %v2661 = vlaneseq
        %v2662 = vshrl.u32 %v2661, 7
        %v2663 = vsub.s32 %v2660, %v2662
        %v2664 = vrot.slane %v2533, %v2663
        %vm2665 = vcmask 786112
        %v2666 = vsel %vm2665, %v2664, %v2659
        %v2667 = vadd.s32 %v885, 4294967200
        %v2668 = vlaneseq
        %v2669 = vshrl.u32 %v2668, 7
        %v2670 = vsub.s32 %v2667, %v2669
        %v2671 = vrot.slane %v2534, %v2670
        %vm2672 = vcmask 851712
        %v2673 = vsel %vm2672, %v2671, %v2666
        %v2674 = vadd.s32 %v885, 4294967192
        %v2675 = vlaneseq
        %v2676 = vshrl.u32 %v2675, 7
        %v2677 = vsub.s32 %v2674, %v2676
        %v2678 = vrot.slane %v2535, %v2677
        %vm2679 = vcmask 917312
        %v2680 = vsel %vm2679, %v2678, %v2673
        %v2681 = vadd.s32 %v885, 4294967184
        %v2682 = vlaneseq
        %v2683 = vshrl.u32 %v2682, 7
        %v2684 = vsub.s32 %v2681, %v2683
        %v2685 = vrot.slane %v2536, %v2684
        %vm2686 = vcmask 982912
        %v2687 = vsel %vm2686, %v2685, %v2680
        %v2688 = vadd.s32 %v885, 4294967176
        %v2689 = vlaneseq
        %v2690 = vshrl.u32 %v2689, 7
        %v2691 = vsub.s32 %v2688, %v2690
        %v2692 = vrot.slane %v2537, %v2691
        %vm2693 = vcmask 1048512
        %v2694 = vsel %vm2693, %v2692, %v2687
        %v2695 = vlaneseq
        %v2696 = vshrl.u32 %v2695, 7
        %v2697 = vsub.s32 %v885, %v2696
        %v2698 = vrot.slane %v2538, %v2697
        %v2699 = vlaneseq
        %v2700 = vshrl.u32 %v2699, 7
        %v2701 = vsub.s32 %v2590, %v2700
        %v2702 = vrot.slane %v2539, %v2701
        %v2703 = vsel %vm2595, %v2702, %v2698
        %v2704 = vlaneseq
        %v2705 = vshrl.u32 %v2704, 7
        %v2706 = vsub.s32 %v2597, %v2705
        %v2707 = vrot.slane %v2540, %v2706
        %v2708 = vsel %vm2602, %v2707, %v2703
        %v2709 = vlaneseq
        %v2710 = vshrl.u32 %v2709, 7
        %v2711 = vsub.s32 %v2604, %v2710
        %v2712 = vrot.slane %v2541, %v2711
        %v2713 = vsel %vm2609, %v2712, %v2708
        %v2714 = vlaneseq
        %v2715 = vshrl.u32 %v2714, 7
        %v2716 = vsub.s32 %v2611, %v2715
        %v2717 = vrot.slane %v2542, %v2716
        %v2718 = vsel %vm2616, %v2717, %v2713
        %v2719 = vlaneseq
        %v2720 = vshrl.u32 %v2719, 7
        %v2721 = vsub.s32 %v2618, %v2720
        %v2722 = vrot.slane %v2543, %v2721
        %v2723 = vsel %vm2623, %v2722, %v2718
        %v2724 = vlaneseq
        %v2725 = vshrl.u32 %v2724, 7
        %v2726 = vsub.s32 %v2625, %v2725
        %v2727 = vrot.slane %v2544, %v2726
        %v2728 = vsel %vm2630, %v2727, %v2723
        %v2729 = vlaneseq
        %v2730 = vshrl.u32 %v2729, 7
        %v2731 = vsub.s32 %v2632, %v2730
        %v2732 = vrot.slane %v2545, %v2731
        %v2733 = vsel %vm2637, %v2732, %v2728
        %v2734 = vlaneseq
        %v2735 = vshrl.u32 %v2734, 7
        %v2736 = vsub.s32 %v2639, %v2735
        %v2737 = vrot.slane %v2546, %v2736
        %v2738 = vsel %vm2644, %v2737, %v2733
        %v2739 = vlaneseq
        %v2740 = vshrl.u32 %v2739, 7
        %v2741 = vsub.s32 %v2646, %v2740
        %v2742 = vrot.slane %v2547, %v2741
        %v2743 = vsel %vm2651, %v2742, %v2738
        %v2744 = vlaneseq
        %v2745 = vshrl.u32 %v2744, 7
        %v2746 = vsub.s32 %v2653, %v2745
        %v2747 = vrot.slane %v2548, %v2746
        %v2748 = vsel %vm2658, %v2747, %v2743
        %v2749 = vlaneseq
        %v2750 = vshrl.u32 %v2749, 7
        %v2751 = vsub.s32 %v2660, %v2750
        %v2752 = vrot.slane %v2549, %v2751
        %v2753 = vsel %vm2665, %v2752, %v2748
        %v2754 = vlaneseq
        %v2755 = vshrl.u32 %v2754, 7
        %v2756 = vsub.s32 %v2667, %v2755
        %v2757 = vrot.slane %v2550, %v2756
        %v2758 = vsel %vm2672, %v2757, %v2753
        %v2759 = vlaneseq
        %v2760 = vshrl.u32 %v2759, 7
        %v2761 = vsub.s32 %v2674, %v2760
        %v2762 = vrot.slane %v2551, %v2761
        %v2763 = vsel %vm2679, %v2762, %v2758
        %v2764 = vlaneseq
        %v2765 = vshrl.u32 %v2764, 7
        %v2766 = vsub.s32 %v2681, %v2765
        %v2767 = vrot.slane %v2552, %v2766
        %v2768 = vsel %vm2686, %v2767, %v2763
        %v2769 = vlaneseq
        %v2770 = vshrl.u32 %v2769, 7
        %v2771 = vsub.s32 %v2688, %v2770
        %v2772 = vrot.slane %v2553, %v2771
        %v2773 = vsel %vm2693, %v2772, %v2768
        %2776 = vst [vmem:[%s488] sm:$0x1] %v2694
        %2777 = vst [vmem:[%s488 + $0x1] sm:$0x1] %v2773
        %s2778 = sand.u32 %s330, 1
        %s2779 = scalar_lea.sflag [#allocation4], %s2778
        %s2780 = sand.u32 %s330, 1
        %s2781 = smul.addr %s2780, 2
        %s2782 = scalar_lea.vmem [#allocation3], %s2781
        // Predicated region
        $region73: #{tpu_custom_call.1} parent=71 // pred_check
          %p2783 = pneg %p340
        $region74: #{tpu_custom_call.1} parent=71 // pred_check_branch
          %2785 = sbr.rel (%p2783) target = $region76
        $region75: #{tpu_custom_call.1} parent=71 // pred_region
          %s2786 = smul.u32 2, %s29
          %s2788 = ssub.s32 32, 32
          %2789 = vsyncadd %s2779, %s2788
          %s2790 = smul.addr %s2786, 16
          %s2791 = scalar_lea.hbm %s13, %s2790
          %s2792 = sshll.u32 %s2782, 4
          %s2793 = int_to_ptr.vmem [resolvable:$true] %s2792
          %2798 = dma.vmem_to_hbm [thread:$0]  %s2793, 32, %s2791, %s2779, 16, 16, 1
        $region76: #{tpu_custom_call.1} parent=71 // pred_fallthru
          _
      $region72: #{tpu_custom_call.1} parent=5 // pred_fallthru
        _
      %p2799 = scmp.le.s32.totalorder 2, %s24
      // Predicated region
      $region77: #{tpu_custom_call.1} parent=5 // pred_check
        %p2800 = pneg %p2799
      $region78: #{tpu_custom_call.1} parent=5 // pred_check_branch
        %2802 = sbr.rel (%p2800) target = $region80
      $region79: #{tpu_custom_call.1} parent=5 // pred_region
        %s2803 = ssub.s32 %s24, 2
        // Predicated region
        $region81: #{tpu_custom_call.1} parent=79 // pred_check
          %p2804 = pneg %p346
        $region82: #{tpu_custom_call.1} parent=79 // pred_check_branch
          %2806 = sbr.rel (%p2804) target = $region84
        $region83: #{tpu_custom_call.1} parent=79 // pred_region
          %s2807 = sand.u32 %s331, 1
          %s2808 = scalar_lea.sflag [#allocation4], %s2807
          %s2809 = sand.u32 %s331, 1
          %s2810 = smul.addr %s2809, 2
          %s2811 = scalar_lea.vmem [#allocation3], %s2810
          %2812 = dma.done %s2808, 32
        $region84: #{tpu_custom_call.1} parent=79 // pred_fallthru
          _
      $region80: #{tpu_custom_call.1} parent=5 // pred_fallthru
        _
    $region6: #{tpu_custom_call.1} parent=1 // loop_footer
      %s28 = sadd.s32 1, %s24
    $region7: #{tpu_custom_call.1} parent=1 // loop_footer_branch
      %23 = sbr.rel target = $region3
    $region8: #{tpu_custom_call.1} parent=1 // loop_exit
      _
    %2813 = vsyncpa [#allocation4], 1
    %s2814 = scalar_lea.sflag [#allocation4], 1
    %2815 = vsyncpa %s2814, 1

</llo_original>
